<compile_context>
chip_gen: v7x
topology: tpu7x:2x2x1
jax: 0.10.0
libtpu: 0.0.40
codegen_flags: <defaults>
</compile_context>

<pallas_src>
import math

import jax
import jax.numpy as jnp
import numpy as np
from jax.experimental import pallas as pl
from jax.experimental.pallas import tpu as pltpu

NTOTALDOFS = 10       # stand-in constant for ChemData().NTOTALDOFS
D_RBF = 64            # rbf(): 64 gaussians on linspace(0, 20, 64), sigma = 20/64
D_MAX = 20.0
INV_SIGMA = D_RBF / D_MAX
LN_EPS = 1e-5         # torch.nn.LayerNorm default eps


def _layernorm(x, gamma, beta):
    mu = jnp.mean(x, axis=-1, keepdims=True)
    var = jnp.mean((x - mu) ** 2, axis=-1, keepdims=True)
    return (x - mu) * jax.lax.rsqrt(var + LN_EPS) * gamma + beta


# ------------------------------ kernels ------------------------------------ #

def _seq_kernel(state_ref, sct_ref, msa_ref,
                gs_ref, bs_ref, wl_ref, wr_ref, bd_ref,
                ws_ref, bsc_ref, gm_ref, bm_ref,
                state_o, lproj_o, rproj_o, msa_o):
    """Fused per-residue work (grid over (batch, L-block)):
       state_n = LN(state);  lproj = state_n@W_l + b_dist;  rproj = state_n@W_r
       msa_out = sctors@W_sct + b_sct + LN(msa)."""
    f32 = jnp.float32
    sn = _layernorm(state_ref[0].astype(f32), gs_ref[...], bs_ref[...])
    state_o[0] = sn.astype(state_o.dtype)
    lproj_o[0] = jnp.dot(sn, wl_ref[...], preferred_element_type=f32) + bd_ref[...]
    rproj_o[0] = jnp.dot(sn, wr_ref[...], preferred_element_type=f32)
    proj = jnp.dot(sct_ref[0].astype(f32), ws_ref[...],
                   preferred_element_type=f32) + bsc_ref[...]
    msa_o[0] = (proj + _layernorm(msa_ref[0].astype(f32),
                                  gm_ref[...], bm_ref[...])).astype(msa_o.dtype)


def _pair_body(cai_ref, cajt_ref, lproj_ref, rproj_ref, pair_ref,
               wrbf_ref, gp_ref, bp_ref, out_ref, mask):
    f32 = jnp.float32
    cai = cai_ref[0].astype(f32)     # (ti, 3)  -- residues on sublanes
    cajt = cajt_ref[0].astype(f32)   # (3, tj)  -- residues on lanes
    ti = cai.shape[0]
    tj = cajt.shape[1]
    d_pair = out_ref.shape[-1]

    # Direct per-coordinate squared distance (VPU-only; matches reference numerics).
    d2 = (cai[:, 0:1] - cajt[0:1, :]) ** 2
    d2 = d2 + (cai[:, 1:2] - cajt[1:2, :]) ** 2
    d2 = d2 + (cai[:, 2:3] - cajt[2:3, :]) ** 2
    dist = jnp.sqrt(d2)                                               # (ti, tj)

    # rbf(): 64 gaussians centered at linspace(0, 20, 64), sigma = 20/64
    mu = jax.lax.broadcasted_iota(f32, (1, 1, D_RBF), 2) * (D_MAX / (D_RBF - 1))
    z = (dist[:, :, None] - mu) * INV_SIGMA
    rbf = jnp.exp(-(z * z))                                           # (ti, tj, 64)
    if mask is not None:
        rbf = rbf * mask[:, :, None].astype(f32)

    # Accumulate into one full-size f32 buffer: LN(pair) first, then the matmul
    # result, then the left/right broadcasts (keeps peak live temps low).
    acc = _layernorm(pair_ref[0].astype(f32), gp_ref[...], bp_ref[...])
    acc = acc + jnp.dot(rbf.reshape(ti * tj, D_RBF).astype(wrbf_ref.dtype),
                        wrbf_ref[...],
                        preferred_element_type=f32).reshape(ti, tj, d_pair)
    acc = acc + lproj_ref[0][:, None, :]     # lproj already carries b_dist
    acc = acc + rproj_ref[0][None, :, :]
    out_ref[0] = acc.astype(out_ref.dtype)


def _pair_kernel_nomask(cai_ref, cajt_ref, lproj_ref, rproj_ref, pair_ref,
                        wrbf_ref, gp_ref, bp_ref, out_ref):
    _pair_body(cai_ref, cajt_ref, lproj_ref, rproj_ref, pair_ref,
               wrbf_ref, gp_ref, bp_ref, out_ref, mask=None)


def _pair_kernel_masked(cai_ref, cajt_ref, mask_ref, lproj_ref, rproj_ref, pair_ref,
                        wrbf_ref, gp_ref, bp_ref, out_ref):
    _pair_body(cai_ref, cajt_ref, lproj_ref, rproj_ref, pair_ref,
               wrbf_ref, gp_ref, bp_ref, out_ref, mask=mask_ref[0])


# ------------------------------ wrapper ------------------------------------ #

def _tpu_vmem_bytes():
    """Physical VMEM per TensorCore; conservative (v7x-class) fallback."""
    try:
        return int(pltpu.get_tpu_info().vmem_capacity_bytes)
    except Exception:
        return 64 * 1024 * 1024


def recycling_all_features(msa, pair, xyz, state, sctors, params, mask_recycle=None,
                           tile_i=None, tile_j=None, use_bf16_rbf=None,
                           donate_pair=False):
    f32 = jnp.float32
    B, L = pair.shape[:2]
    d_msa = msa.shape[-1]
    d_pair = pair.shape[-1]
    d_state = state.shape[-1]

    # Split proj_dist weight once at the JAX level (no per-tile in-kernel slicing).
    W_dist = params["W_dist"]
    W_rbf = W_dist[:D_RBF]
    W_l = W_dist[D_RBF:D_RBF + d_state]
    W_r = W_dist[D_RBF + d_state:]

    # bf16 RBF matmul (f32 accumulation) — worthwhile on v7x / bf16 models.
    if use_bf16_rbf is None:
        use_bf16_rbf = (pair.dtype == jnp.bfloat16)
    if use_bf16_rbf:
        W_rbf = W_rbf.astype(jnp.bfloat16)

    sct2 = sctors.reshape(B, L, 2 * NTOTALDOFS)

    # ---------------- 1) fused per-residue kernel, grid (B, L/tl) ----------- #
    if L % 256 == 0:
        tl = 256
    elif L % 128 == 0:
        tl = 128
    else:
        tl = L

    state_n, lproj, rproj, msa_o = pl.pallas_call(
        _seq_kernel,
        out_shape=(jax.ShapeDtypeStruct((B, L, d_state), state.dtype),
                   jax.ShapeDtypeStruct((B, L, d_pair), f32),
                   jax.ShapeDtypeStruct((B, L, d_pair), f32),
                   jax.ShapeDtypeStruct((B, L, d_msa), msa.dtype)),
        grid=(B, L // tl),
        in_specs=[pl.BlockSpec((1, tl, d_state), lambda b, l: (b, l, 0)),
                  pl.BlockSpec((1, tl, 2 * NTOTALDOFS), lambda b, l: (b, l, 0)),
                  pl.BlockSpec((1, tl, d_msa), lambda b, l: (b, l, 0)),
                  pl.BlockSpec((1, d_state), lambda b, l: (0, 0)),
                  pl.BlockSpec((1, d_state), lambda b, l: (0, 0)),
                  pl.BlockSpec((d_state, d_pair), lambda b, l: (0, 0)),
                  pl.BlockSpec((d_state, d_pair), lambda b, l: (0, 0)),
                  pl.BlockSpec((1, d_pair), lambda b, l: (0, 0)),
                  pl.BlockSpec((2 * NTOTALDOFS, d_msa), lambda b, l: (0, 0)),
                  pl.BlockSpec((1, d_msa), lambda b, l: (0, 0)),
                  pl.BlockSpec((1, d_msa), lambda b, l: (0, 0)),
                  pl.BlockSpec((1, d_msa), lambda b, l: (0, 0))],
        out_specs=(pl.BlockSpec((1, tl, d_state), lambda b, l: (b, l, 0)),
                   pl.BlockSpec((1, tl, d_pair), lambda b, l: (b, l, 0)),
                   pl.BlockSpec((1, tl, d_pair), lambda b, l: (b, l, 0)),
                   pl.BlockSpec((1, tl, d_msa), lambda b, l: (b, l, 0))),
        compiler_params=pltpu.CompilerParams(
            dimension_semantics=("parallel", "parallel")),
    )(state, sct2, msa,
      params["g_state"], params["b_state"], W_l, W_r, params["b_dist"],
      params["W_sct"], params["b_sct"], params["g_msa"], params["b_msa"])

    # ---------------- 2) pair kernel, grid (B, L/ti, L/tj) ------------------ #
    # Tile selection: lane-dense d_pair last dim; tiles sized from VMEM capacity
    # (64x128 f32 tile ~= 4 MiB/buffer -> comfortable on v7x's 64 MiB VMEM;
    #  128x128 on 128 MiB parts).  L that doesn't divide the tile is padded.
    vmem_bytes = _tpu_vmem_bytes()
    big_vmem = vmem_bytes >= 100 * 1024 * 1024
    if L <= 128:
        ti = tile_i if tile_i is not None else L
        tj = tile_j if tile_j is not None else L
    else:
        ti = tile_i if tile_i is not None else (128 if big_vmem else 64)
        tj = tile_j if tile_j is not None else 128
    vmem_limit = (96 if big_vmem else 48) * 1024 * 1024

    lcm = (ti * tj) // math.gcd(ti, tj)
    L_pad = ((L + lcm - 1) // lcm) * lcm
    pad = L_pad - L

    ca_i = xyz[:, :, 1, :]                                  # (B, L, 3) Ca-or-P
    lproj_p, rproj_p, pair_in = lproj, rproj, pair
    if pad:
        ca_i = jnp.pad(ca_i, ((0, 0), (0, pad), (0, 0)))
        lproj_p = jnp.pad(lproj_p, ((0, 0), (0, pad), (0, 0)))
        rproj_p = jnp.pad(rproj_p, ((0, 0), (0, pad), (0, 0)))
        pair_in = jnp.pad(pair_in, ((0, 0), (0, pad), (0, pad), (0, 0)))
    ca_jt = jnp.swapaxes(ca_i, 1, 2)                        # (B, 3, L_pad)

    common_specs = [
        pl.BlockSpec((1, ti, d_pair), lambda b, i, j: (b, i, 0)),          # lproj (+bias)
        pl.BlockSpec((1, tj, d_pair), lambda b, i, j: (b, j, 0)),          # rproj
        pl.BlockSpec((1, ti, tj, d_pair), lambda b, i, j: (b, i, j, 0)),   # pair in
        pl.BlockSpec((D_RBF, d_pair), lambda b, i, j: (0, 0)),             # W_rbf
        pl.BlockSpec((1, d_pair), lambda b, i, j: (0, 0)),                 # g_pair
        pl.BlockSpec((1, d_pair), lambda b, i, j: (0, 0)),                 # b_pair
    ]
    ca_specs = [
        pl.BlockSpec((1, ti, 3), lambda b, i, j: (b, i, 0)),
        pl.BlockSpec((1, 3, tj), lambda b, i, j: (b, 0, j)),
    ]

    mask_bytes = 0
    if mask_recycle is None:
        kernel = _pair_kernel_nomask
        in_specs = ca_specs + common_specs
        args = (ca_i, ca_jt, lproj_p, rproj_p, pair_in,
                W_rbf, params["g_pair"], params["b_pair"])
        pair_arg_idx = 4
    else:
        # Stream the mask in a narrow dtype; only widen bool -> bf16.
        mask = mask_recycle
        if mask.dtype == jnp.bool_:
            mask = mask.astype(jnp.bfloat16)
        if pad:
            mask = jnp.pad(mask, ((0, 0), (0, pad), (0, pad)))
        kernel = _pair_kernel_masked
        in_specs = (ca_specs
                    + [pl.BlockSpec((1, ti, tj), lambda b, i, j: (b, i, j))]
                    + common_specs)
        args = (ca_i, ca_jt, mask, lproj_p, rproj_p, pair_in,
                W_rbf, params["g_pair"], params["b_pair"])
        pair_arg_idx = 5
        mask_bytes = int(B * L_pad * L_pad * mask.dtype.itemsize)

    n_pairs = B * L_pad * L_pad
    cost = pl.CostEstimate(
        flops=int(2 * n_pairs * D_RBF * d_pair + 10 * n_pairs * d_pair),
        transcendentals=int(n_pairs * (D_RBF + 2)),
        bytes_accessed=int(2 * n_pairs * d_pair * pair.dtype.itemsize
                           + 4 * B * L_pad * d_pair * 4 + mask_bytes))

    extra = {}
    if donate_pair:
        # pair is the only O(L^2) tensor; aliasing halves its HBM footprint.
        extra["input_output_aliases"] = {pair_arg_idx: 0}

    pair_o = pl.pallas_call(
        kernel,
        out_shape=jax.ShapeDtypeStruct((B, L_pad, L_pad, d_pair), pair.dtype),
        grid=(B, L_pad // ti, L_pad // tj),
        in_specs=in_specs,
        out_specs=pl.BlockSpec((1, ti, tj, d_pair), lambda b, i, j: (b, i, j, 0)),
        compiler_params=pltpu.CompilerParams(
            dimension_semantics=("parallel", "parallel", "parallel"),
            vmem_limit_bytes=vmem_limit),
        cost_estimate=cost,
        **extra,
    )(*args)

    if pad:
        pair_o = pair_o[:, :L, :L, :]

    return msa_o, pair_o, state_n


# --------------------------- params / reference ----------------------------- #

def init_params(key, d_msa=256, d_pair=128, d_state=32):
    f32 = jnp.float32
    d_in = D_RBF + 2 * d_state
    k1, k2 = jax.random.split(key)
    return {
        "W_dist": jax.random.normal(k1, (d_in, d_pair), f32) / np.sqrt(d_in),
        "b_dist": jnp.zeros((1, d_pair), f32),
        "W_sct": jax.random.normal(k2, (2 * NTOTALDOFS, d_msa), f32) / np.sqrt(2 * NTOTALDOFS),
        "b_sct": jnp.zeros((1, d_msa), f32),
        "g_pair": jnp.ones((1, d_pair), f32), "b_pair": jnp.zeros((1, d_pair), f32),
        "g_msa": jnp.ones((1, d_msa), f32), "b_msa": jnp.zeros((1, d_msa), f32),
        "g_state": jnp.ones((1, d_state), f32), "b_state": jnp.zeros((1, d_state), f32),
    }


def reference(msa, pair, xyz, state, sctors, params, mask_recycle=None):
    def ln(x, g, b):
        mu = x.mean(-1, keepdims=True)
        var = ((x - mu) ** 2).mean(-1, keepdims=True)
        return (x - mu) / jnp.sqrt(var + LN_EPS) * g.reshape(-1) + b.reshape(-1)

    B, L = pair.shape[:2]
    d_state = state.shape[-1]
    state_n = ln(state, params["g_state"], params["b_state"])
    ca = xyz[:, :, 1, :]
    diff = ca[:, :, None, :] - ca[:, None, :, :]
    d = jnp.sqrt(jnp.sum(diff * diff, axis=-1))
    mu = jnp.linspace(0.0, D_MAX, D_RBF)
    rbf = jnp.exp(-(((d[..., None] - mu) * INV_SIGMA) ** 2))
    if mask_recycle is not None:
        rbf = mask_recycle[..., None].astype(jnp.float32) * rbf
    left = jnp.broadcast_to(state_n[:, :, None, :], (B, L, L, d_state))
    right = jnp.broadcast_to(state_n[:, None, :, :], (B, L, L, d_state))
    feat = jnp.concatenate([rbf, left, right], axis=-1)
    dist = feat @ params["W_dist"] + params["b_dist"].reshape(-1)
    pair_o = dist + ln(pair, params["g_pair"], params["b_pair"])
    sct = sctors.reshape(B, L, 2 * NTOTALDOFS) @ params["W_sct"] + params["b_sct"].reshape(-1)
    msa_o = sct + ln(msa, params["g_msa"], params["b_msa"])
    return msa_o, pair_o, state_n


if __name__ == "__main__":
    B, L, A = 2, 8, 3
    d_msa, d_pair, d_state = 256, 128, 32

    key = jax.random.PRNGKey(0)
    kp, km, kpr, kx, ks, kt, kmsk = jax.random.split(key, 7)
    params = init_params(kp, d_msa, d_pair, d_state)
    msa = jax.random.normal(km, (B, L, d_msa), jnp.float32)
    pair = jax.random.normal(kpr, (B, L, L, d_pair), jnp.float32)
    xyz = 5.0 * jax.random.normal(kx, (B, L, A, 3), jnp.float32)
    state = jax.random.normal(ks, (B, L, d_state), jnp.float32)
    sctors = jax.random.normal(kt, (B, L, NTOTALDOFS, 2), jnp.float32)
    mask = jax.random.bernoulli(kmsk, 0.7, (B, L, L))      # bool mask

    # no-mask path
    out = recycling_all_features(msa, pair, xyz, state, sctors, params, mask_recycle=None)
    jax.block_until_ready(out)
    ref = reference(msa, pair, xyz, state, sctors, params, mask_recycle=None)
    for o, r in zip(out, ref):
        np.testing.assert_allclose(np.asarray(o), np.asarray(r), rtol=2e-4, atol=2e-4)

    # masked path
    out_m = recycling_all_features(msa, pair, xyz, state, sctors, params, mask_recycle=mask)
    jax.block_until_ready(out_m)
    ref_m = reference(msa, pair, xyz, state, sctors, params, mask_recycle=mask)
    for o, r in zip(out_m, ref_m):
        np.testing.assert_allclose(np.asarray(o), np.asarray(r), rtol=2e-4, atol=2e-4)

    print("KERNEL_OK")
</pallas_src>

<mosaic_0001>
module attributes {stable_mosaic.version = 11 : i64} {
  func.func @_seq_kernel(%arg0: i32, %arg1: i32, %arg2: memref<1x8x32xf32, #tpu.memory_space<vmem>>, %arg3: memref<1x8x20xf32, #tpu.memory_space<vmem>>, %arg4: memref<1x8x256xf32, #tpu.memory_space<vmem>>, %arg5: memref<1x32xf32, #tpu.memory_space<vmem>>, %arg6: memref<1x32xf32, #tpu.memory_space<vmem>>, %arg7: memref<32x128xf32, #tpu.memory_space<vmem>>, %arg8: memref<32x128xf32, #tpu.memory_space<vmem>>, %arg9: memref<1x128xf32, #tpu.memory_space<vmem>>, %arg10: memref<20x256xf32, #tpu.memory_space<vmem>>, %arg11: memref<1x256xf32, #tpu.memory_space<vmem>>, %arg12: memref<1x256xf32, #tpu.memory_space<vmem>>, %arg13: memref<1x256xf32, #tpu.memory_space<vmem>>, %arg14: memref<1x8x32xf32, #tpu.memory_space<vmem>>, %arg15: memref<1x8x128xf32, #tpu.memory_space<vmem>>, %arg16: memref<1x8x128xf32, #tpu.memory_space<vmem>>, %arg17: memref<1x8x256xf32, #tpu.memory_space<vmem>>) attributes {dimension_semantics = [#tpu.dimension_semantics<parallel>, #tpu.dimension_semantics<parallel>], iteration_bounds = array<i64: 2, 1>, scalar_prefetch = 0 : i64, scratch_operands = 0 : i64, tpu.core_type = #tpu.core_type<tc>, window_params = [{transform_indices = @transform_0, window_bounds = array<i64: 1, 8, 32>}, {transform_indices = @transform_1, window_bounds = array<i64: 1, 8, 20>}, {transform_indices = @transform_2, window_bounds = array<i64: 1, 8, 256>}, {pipeline_mode = #tpu.pipeline_mode<synchronous>, transform_indices = @transform_3, window_bounds = array<i64: 1, 32>}, {pipeline_mode = #tpu.pipeline_mode<synchronous>, transform_indices = @transform_4, window_bounds = array<i64: 1, 32>}, {pipeline_mode = #tpu.pipeline_mode<synchronous>, transform_indices = @transform_5, window_bounds = array<i64: 32, 128>}, {pipeline_mode = #tpu.pipeline_mode<synchronous>, transform_indices = @transform_6, window_bounds = array<i64: 32, 128>}, {pipeline_mode = #tpu.pipeline_mode<synchronous>, transform_indices = @transform_7, window_bounds = array<i64: 1, 128>}, {pipeline_mode = #tpu.pipeline_mode<synchronous>, transform_indices = @transform_8, window_bounds = array<i64: 20, 256>}, {pipeline_mode = #tpu.pipeline_mode<synchronous>, transform_indices = @transform_9, window_bounds = array<i64: 1, 256>}, {pipeline_mode = #tpu.pipeline_mode<synchronous>, transform_indices = @transform_10, window_bounds = array<i64: 1, 256>}, {pipeline_mode = #tpu.pipeline_mode<synchronous>, transform_indices = @transform_11, window_bounds = array<i64: 1, 256>}, {transform_indices = @transform_12, window_bounds = array<i64: 1, 8, 32>}, {transform_indices = @transform_13, window_bounds = array<i64: 1, 8, 128>}, {transform_indices = @transform_14, window_bounds = array<i64: 1, 8, 128>}, {transform_indices = @transform_15, window_bounds = array<i64: 1, 8, 256>}]} {
    %c0 = arith.constant 0 : index
    %c0_0 = arith.constant 0 : index
    %c0_1 = arith.constant 0 : index
    %0 = vector.load %arg2[%c0, %c0_0, %c0_1] : memref<1x8x32xf32, #tpu.memory_space<vmem>>, vector<1x8x32xf32>
    %1 = vector.shape_cast %0 : vector<1x8x32xf32> to vector<8x32xf32>
    %c0_2 = arith.constant 0 : index
    %c0_3 = arith.constant 0 : index
    %2 = vector.load %arg5[%c0_2, %c0_3] : memref<1x32xf32, #tpu.memory_space<vmem>>, vector<1x32xf32>
    %c0_4 = arith.constant 0 : index
    %c0_5 = arith.constant 0 : index
    %3 = vector.load %arg6[%c0_4, %c0_5] : memref<1x32xf32, #tpu.memory_space<vmem>>, vector<1x32xf32>
    %cst = arith.constant dense<0.000000e+00> : vector<8xf32>
    %4 = vector.multi_reduction <add>, %1, %cst [1] : vector<8x32xf32> to vector<8xf32>
    %5 = vector.shape_cast %4 : vector<8xf32> to vector<8x1xf32>
    %cst_6 = arith.constant 3.200000e+01 : f32
    %6 = vector.broadcast %cst_6 : f32 to vector<8x1xf32>
    %7 = arith.divf %5, %6 : vector<8x1xf32>
    %8 = vector.broadcast %7 : vector<8x1xf32> to vector<8x32xf32>
    %9 = arith.subf %1, %8 : vector<8x32xf32>
    %10 = arith.mulf %9, %9 : vector<8x32xf32>
    %cst_7 = arith.constant dense<0.000000e+00> : vector<8xf32>
    %11 = vector.multi_reduction <add>, %10, %cst_7 [1] : vector<8x32xf32> to vector<8xf32>
    %12 = vector.shape_cast %11 : vector<8xf32> to vector<8x1xf32>
    %cst_8 = arith.constant 3.200000e+01 : f32
    %13 = vector.broadcast %cst_8 : f32 to vector<8x1xf32>
    %14 = arith.divf %12, %13 : vector<8x1xf32>
    %15 = vector.broadcast %7 : vector<8x1xf32> to vector<8x32xf32>
    %16 = arith.subf %1, %15 : vector<8x32xf32>
    %cst_9 = arith.constant 9.99999974E-6 : f32
    %17 = vector.broadcast %cst_9 : f32 to vector<8x1xf32>
    %18 = arith.addf %14, %17 : vector<8x1xf32>
    %19 = math.rsqrt %18 : vector<8x1xf32>
    %20 = vector.broadcast %19 : vector<8x1xf32> to vector<8x32xf32>
    %21 = arith.mulf %16, %20 : vector<8x32xf32>
    %22 = vector.broadcast %2 : vector<1x32xf32> to vector<8x32xf32>
    %23 = arith.mulf %21, %22 : vector<8x32xf32>
    %24 = vector.broadcast %3 : vector<1x32xf32> to vector<8x32xf32>
    %25 = arith.addf %23, %24 : vector<8x32xf32>
    %c0_10 = arith.constant 0 : index
    %c0_11 = arith.constant 0 : index
    %c0_12 = arith.constant 0 : index
    %26 = vector.load %arg14[%c0_10, %c0_11, %c0_12] : memref<1x8x32xf32, #tpu.memory_space<vmem>>, vector<1x8x32xf32>
    %27 = vector.shape_cast %26 : vector<1x8x32xf32> to vector<8x32xf32>
    %28 = vector.shape_cast %25 : vector<8x32xf32> to vector<1x8x32xf32>
    tpu.vector_store %arg14[%c0_10, %c0_11, %c0_12], %28 {strides = array<i32>} : memref<1x8x32xf32, #tpu.memory_space<vmem>>, vector<1x8x32xf32>,
    %c0_13 = arith.constant 0 : index
    %c0_14 = arith.constant 0 : index
    %29 = vector.load %arg7[%c0_13, %c0_14] : memref<32x128xf32, #tpu.memory_space<vmem>>, vector<32x128xf32>
    %cst_15 = arith.constant dense<0.000000e+00> : vector<8x128xf32>
    %30 = tpu.matmul %25, %29, %cst_15 {dimension_numbers = #tpu.dot_dimension_numbers<[1], [0], [0], [1], [0, 0, 1, 1], [], []>} : vector<8x32xf32>, vector<32x128xf32>, vector<8x128xf32> -> vector<8x128xf32>
    %c0_16 = arith.constant 0 : index
    %c0_17 = arith.constant 0 : index
    %31 = vector.load %arg9[%c0_16, %c0_17] : memref<1x128xf32, #tpu.memory_space<vmem>>, vector<1x128xf32>
    %32 = vector.broadcast %31 : vector<1x128xf32> to vector<8x128xf32>
    %33 = arith.addf %30, %32 : vector<8x128xf32>
    %c0_18 = arith.constant 0 : index
    %c0_19 = arith.constant 0 : index
    %c0_20 = arith.constant 0 : index
    %34 = vector.load %arg15[%c0_18, %c0_19, %c0_20] : memref<1x8x128xf32, #tpu.memory_space<vmem>>, vector<1x8x128xf32>
    %35 = vector.shape_cast %34 : vector<1x8x128xf32> to vector<8x128xf32>
    %36 = vector.shape_cast %33 : vector<8x128xf32> to vector<1x8x128xf32>
    tpu.vector_store %arg15[%c0_18, %c0_19, %c0_20], %36 {strides = array<i32>} : memref<1x8x128xf32, #tpu.memory_space<vmem>>, vector<1x8x128xf32>,
    %c0_21 = arith.constant 0 : index
    %c0_22 = arith.constant 0 : index
    %37 = vector.load %arg8[%c0_21, %c0_22] : memref<32x128xf32, #tpu.memory_space<vmem>>, vector<32x128xf32>
    %cst_23 = arith.constant dense<0.000000e+00> : vector<8x128xf32>
    %38 = tpu.matmul %25, %37, %cst_23 {dimension_numbers = #tpu.dot_dimension_numbers<[1], [0], [0], [1], [0, 0, 1, 1], [], []>} : vector<8x32xf32>, vector<32x128xf32>, vector<8x128xf32> -> vector<8x128xf32>
    %c0_24 = arith.constant 0 : index
    %c0_25 = arith.constant 0 : index
    %c0_26 = arith.constant 0 : index
    %39 = vector.load %arg16[%c0_24, %c0_25, %c0_26] : memref<1x8x128xf32, #tpu.memory_space<vmem>>, vector<1x8x128xf32>
    %40 = vector.shape_cast %39 : vector<1x8x128xf32> to vector<8x128xf32>
    %41 = vector.shape_cast %38 : vector<8x128xf32> to vector<1x8x128xf32>
    tpu.vector_store %arg16[%c0_24, %c0_25, %c0_26], %41 {strides = array<i32>} : memref<1x8x128xf32, #tpu.memory_space<vmem>>, vector<1x8x128xf32>,
    %c0_27 = arith.constant 0 : index
    %c0_28 = arith.constant 0 : index
    %c0_29 = arith.constant 0 : index
    %42 = vector.load %arg3[%c0_27, %c0_28, %c0_29] : memref<1x8x20xf32, #tpu.memory_space<vmem>>, vector<1x8x20xf32>
    %43 = vector.shape_cast %42 : vector<1x8x20xf32> to vector<8x20xf32>
    %c0_30 = arith.constant 0 : index
    %c0_31 = arith.constant 0 : index
    %44 = vector.load %arg10[%c0_30, %c0_31] : memref<20x256xf32, #tpu.memory_space<vmem>>, vector<20x256xf32>
    %cst_32 = arith.constant dense<0.000000e+00> : vector<8x256xf32>
    %45 = tpu.matmul %43, %44, %cst_32 {dimension_numbers = #tpu.dot_dimension_numbers<[1], [0], [0], [1], [0, 0, 1, 1], [], []>} : vector<8x20xf32>, vector<20x256xf32>, vector<8x256xf32> -> vector<8x256xf32>
    %c0_33 = arith.constant 0 : index
    %c0_34 = arith.constant 0 : index
    %46 = vector.load %arg11[%c0_33, %c0_34] : memref<1x256xf32, #tpu.memory_space<vmem>>, vector<1x256xf32>
    %47 = vector.broadcast %46 : vector<1x256xf32> to vector<8x256xf32>
    %48 = arith.addf %45, %47 : vector<8x256xf32>
    %c0_35 = arith.constant 0 : index
    %c0_36 = arith.constant 0 : index
    %c0_37 = arith.constant 0 : index
    %49 = vector.load %arg4[%c0_35, %c0_36, %c0_37] : memref<1x8x256xf32, #tpu.memory_space<vmem>>, vector<1x8x256xf32>
    %50 = vector.shape_cast %49 : vector<1x8x256xf32> to vector<8x256xf32>
    %c0_38 = arith.constant 0 : index
    %c0_39 = arith.constant 0 : index
    %51 = vector.load %arg12[%c0_38, %c0_39] : memref<1x256xf32, #tpu.memory_space<vmem>>, vector<1x256xf32>
    %c0_40 = arith.constant 0 : index
    %c0_41 = arith.constant 0 : index
    %52 = vector.load %arg13[%c0_40, %c0_41] : memref<1x256xf32, #tpu.memory_space<vmem>>, vector<1x256xf32>
    %cst_42 = arith.constant dense<0.000000e+00> : vector<8xf32>
    %53 = vector.multi_reduction <add>, %50, %cst_42 [1] : vector<8x256xf32> to vector<8xf32>
    %54 = vector.shape_cast %53 : vector<8xf32> to vector<8x1xf32>
    %cst_43 = arith.constant 2.560000e+02 : f32
    %55 = vector.broadcast %cst_43 : f32 to vector<8x1xf32>
    %56 = arith.divf %54, %55 : vector<8x1xf32>
    %57 = vector.broadcast %56 : vector<8x1xf32> to vector<8x256xf32>
    %58 = arith.subf %50, %57 : vector<8x256xf32>
    %59 = arith.mulf %58, %58 : vector<8x256xf32>
    %cst_44 = arith.constant dense<0.000000e+00> : vector<8xf32>
    %60 = vector.multi_reduction <add>, %59, %cst_44 [1] : vector<8x256xf32> to vector<8xf32>
    %61 = vector.shape_cast %60 : vector<8xf32> to vector<8x1xf32>
    %cst_45 = arith.constant 2.560000e+02 : f32
    %62 = vector.broadcast %cst_45 : f32 to vector<8x1xf32>
    %63 = arith.divf %61, %62 : vector<8x1xf32>
    %64 = vector.broadcast %56 : vector<8x1xf32> to vector<8x256xf32>
    %65 = arith.subf %50, %64 : vector<8x256xf32>
    %cst_46 = arith.constant 9.99999974E-6 : f32
    %66 = vector.broadcast %cst_46 : f32 to vector<8x1xf32>
    %67 = arith.addf %63, %66 : vector<8x1xf32>
    %68 = math.rsqrt %67 : vector<8x1xf32>
    %69 = vector.broadcast %68 : vector<8x1xf32> to vector<8x256xf32>
    %70 = arith.mulf %65, %69 : vector<8x256xf32>
    %71 = vector.broadcast %51 : vector<1x256xf32> to vector<8x256xf32>
    %72 = arith.mulf %70, %71 : vector<8x256xf32>
    %73 = vector.broadcast %52 : vector<1x256xf32> to vector<8x256xf32>
    %74 = arith.addf %72, %73 : vector<8x256xf32>
    %75 = arith.addf %48, %74 : vector<8x256xf32>
    %c0_47 = arith.constant 0 : index
    %c0_48 = arith.constant 0 : index
    %c0_49 = arith.constant 0 : index
    %76 = vector.load %arg17[%c0_47, %c0_48, %c0_49] : memref<1x8x256xf32, #tpu.memory_space<vmem>>, vector<1x8x256xf32>
    %77 = vector.shape_cast %76 : vector<1x8x256xf32> to vector<8x256xf32>
    %78 = vector.shape_cast %75 : vector<8x256xf32> to vector<1x8x256xf32>
    tpu.vector_store %arg17[%c0_47, %c0_48, %c0_49], %78 {strides = array<i32>} : memref<1x8x256xf32, #tpu.memory_space<vmem>>, vector<1x8x256xf32>,
    return
  }
  func.func @transform_0(%arg0: i32, %arg1: i32) -> (i32, i32, i32) {
    %c0_i32 = arith.constant 0 : i32
    %c0_i32_0 = arith.constant 0 : i32
    return %arg0, %arg1, %c0_i32 : i32, i32, i32
  }
  func.func @transform_1(%arg0: i32, %arg1: i32) -> (i32, i32, i32) {
    %c0_i32 = arith.constant 0 : i32
    %c0_i32_0 = arith.constant 0 : i32
    return %arg0, %arg1, %c0_i32 : i32, i32, i32
  }
  func.func @transform_2(%arg0: i32, %arg1: i32) -> (i32, i32, i32) {
    %c0_i32 = arith.constant 0 : i32
    %c0_i32_0 = arith.constant 0 : i32
    return %arg0, %arg1, %c0_i32 : i32, i32, i32
  }
  func.func @transform_3(%arg0: i32, %arg1: i32) -> (i32, i32) {
    %c0_i32 = arith.constant 0 : i32
    %c0_i32_0 = arith.constant 0 : i32
    %c0_i32_1 = arith.constant 0 : i32
    return %c0_i32, %c0_i32_0 : i32, i32
  }
  func.func @transform_4(%arg0: i32, %arg1: i32) -> (i32, i32) {
    %c0_i32 = arith.constant 0 : i32
    %c0_i32_0 = arith.constant 0 : i32
    %c0_i32_1 = arith.constant 0 : i32
    return %c0_i32, %c0_i32_0 : i32, i32
  }
  func.func @transform_5(%arg0: i32, %arg1: i32) -> (i32, i32) {
    %c0_i32 = arith.constant 0 : i32
    %c0_i32_0 = arith.constant 0 : i32
    %c0_i32_1 = arith.constant 0 : i32
    return %c0_i32, %c0_i32_0 : i32, i32
  }
  func.func @transform_6(%arg0: i32, %arg1: i32) -> (i32, i32) {
    %c0_i32 = arith.constant 0 : i32
    %c0_i32_0 = arith.constant 0 : i32
    %c0_i32_1 = arith.constant 0 : i32
    return %c0_i32, %c0_i32_0 : i32, i32
  }
  func.func @transform_7(%arg0: i32, %arg1: i32) -> (i32, i32) {
    %c0_i32 = arith.constant 0 : i32
    %c0_i32_0 = arith.constant 0 : i32
    %c0_i32_1 = arith.constant 0 : i32
    return %c0_i32, %c0_i32_0 : i32, i32
  }
  func.func @transform_8(%arg0: i32, %arg1: i32) -> (i32, i32) {
    %c0_i32 = arith.constant 0 : i32
    %c0_i32_0 = arith.constant 0 : i32
    %c0_i32_1 = arith.constant 0 : i32
    return %c0_i32, %c0_i32_0 : i32, i32
  }
  func.func @transform_9(%arg0: i32, %arg1: i32) -> (i32, i32) {
    %c0_i32 = arith.constant 0 : i32
    %c0_i32_0 = arith.constant 0 : i32
    %c0_i32_1 = arith.constant 0 : i32
    return %c0_i32, %c0_i32_0 : i32, i32
  }
  func.func @transform_10(%arg0: i32, %arg1: i32) -> (i32, i32) {
    %c0_i32 = arith.constant 0 : i32
    %c0_i32_0 = arith.constant 0 : i32
    %c0_i32_1 = arith.constant 0 : i32
    return %c0_i32, %c0_i32_0 : i32, i32
  }
  func.func @transform_11(%arg0: i32, %arg1: i32) -> (i32, i32) {
    %c0_i32 = arith.constant 0 : i32
    %c0_i32_0 = arith.constant 0 : i32
    %c0_i32_1 = arith.constant 0 : i32
    return %c0_i32, %c0_i32_0 : i32, i32
  }
  func.func @transform_12(%arg0: i32, %arg1: i32) -> (i32, i32, i32) {
    %c0_i32 = arith.constant 0 : i32
    %c0_i32_0 = arith.constant 0 : i32
    return %arg0, %arg1, %c0_i32 : i32, i32, i32
  }
  func.func @transform_13(%arg0: i32, %arg1: i32) -> (i32, i32, i32) {
    %c0_i32 = arith.constant 0 : i32
    %c0_i32_0 = arith.constant 0 : i32
    return %arg0, %arg1, %c0_i32 : i32, i32, i32
  }
  func.func @transform_14(%arg0: i32, %arg1: i32) -> (i32, i32, i32) {
    %c0_i32 = arith.constant 0 : i32
    %c0_i32_0 = arith.constant 0 : i32
    return %arg0, %arg1, %c0_i32 : i32, i32, i32
  }
  func.func @transform_15(%arg0: i32, %arg1: i32) -> (i32, i32, i32) {
    %c0_i32 = arith.constant 0 : i32
    %c0_i32_0 = arith.constant 0 : i32
    return %arg0, %arg1, %c0_i32 : i32, i32, i32
  }
}

</mosaic_0001>

<llo_original>
// kernel: tpu_custom_call.1
$region0: #{tpu_custom_call.1}
  #allocation0 [shape = 'u32[]', space=smem, size = 0x4, offset = 0x4, fixed_abs, tag = 'smem constant byte address 0x4 - core index']
  #allocation1 [shape = 'u32[144,128]{1,0:T(1,128)}', space=vmem, size = 0x12000, scoped, tag = 'internal scratch']
  %s0 = inlined_call_operand.hbm [shape: f32[2,8,32], index: 0, kind: input, shape index: {}]
  %s1 = inlined_call_operand.hbm [shape: f32[2,8,20], index: 1, kind: input, shape index: {}]
  %s2 = inlined_call_operand.hbm [shape: f32[2,8,256], index: 2, kind: input, shape index: {}]
  %s3 = inlined_call_operand.vmem [shape: f32[1,32], index: 3, kind: input, shape index: {}]
  %s4 = inlined_call_operand.vmem [shape: f32[1,32], index: 4, kind: input, shape index: {}]
  %s5 = inlined_call_operand.hbm [shape: f32[32,128], index: 5, kind: input, shape index: {}]
  %s6 = inlined_call_operand.hbm [shape: f32[32,128], index: 6, kind: input, shape index: {}]
  %s7 = inlined_call_operand.vmem [shape: f32[1,128], index: 7, kind: input, shape index: {}]
  %s8 = inlined_call_operand.hbm [shape: f32[20,256], index: 8, kind: input, shape index: {}]
  %s9 = inlined_call_operand.vmem [shape: f32[1,256], index: 9, kind: input, shape index: {}]
  %s10 = inlined_call_operand.vmem [shape: f32[1,256], index: 10, kind: input, shape index: {}]
  %s11 = inlined_call_operand.vmem [shape: f32[1,256], index: 11, kind: input, shape index: {}]
  %s12 = inlined_call_operand.hbm [shape: f32[2,8,32], index: 12, kind: output, shape index: {0}]
  %s13 = inlined_call_operand.hbm [shape: f32[2,8,128], index: 13, kind: output, shape index: {1}]
  %s14 = inlined_call_operand.hbm [shape: f32[2,8,128], index: 14, kind: output, shape index: {2}]
  %s15 = inlined_call_operand.hbm [shape: f32[2,8,256], index: 15, kind: output, shape index: {3}]
  %16 = xla_tuple %s12, %s13, %s14, %s15
  %s17 = sld [smem:[#allocation0]]
  $region129: #{tpu_custom_call.1} parent=0
    _
  %s19 = ssub.s32 1, %s17
  %s20 = scalar_select 0, %s19, %s17
  $region1: #{tpu_custom_call.1} parent=0
    #allocation2 [shape = 'u8[8192]{0}', space=vmem, size = 0x2000, scoped, tag = 'input window, operand 0']
    #allocation3 [shape = 's32[2]{0}', space=sflag, size = 0x8, scoped, tag = 'scoped memory for tpu_custom_call.1']
    #allocation4 [shape = 's32[2]{0}', space=sflag, size = 0x8, scoped, tag = 'scoped memory for tpu_custom_call.1']
    #allocation5 [shape = 'u8[8192]{0}', space=vmem, size = 0x2000, scoped, tag = 'input window, operand 1']
    #allocation6 [shape = 's32[2]{0}', space=sflag, size = 0x8, scoped, tag = 'scoped memory for tpu_custom_call.1']
    #allocation7 [shape = 'u8[16384]{0}', space=vmem, size = 0x4000, scoped, tag = 'input window, operand 2']
    #allocation8 [shape = 'u8[16384]{0}', space=vmem, size = 0x4000, scoped, tag = 'input window, operand 5, single buffered']
    #allocation9 [shape = 's32[1]{0}', space=sflag, size = 0x4, scoped, tag = 'scoped memory for tpu_custom_call.1']
    #allocation10 [shape = 'u8[16384]{0}', space=vmem, size = 0x4000, scoped, tag = 'input window, operand 6, single buffered']
    #allocation11 [shape = 'u8[24576]{0}', space=vmem, size = 0x6000, scoped, tag = 'input window, operand 8, single buffered']
    #allocation12 [shape = 's32[1]{0}', space=sflag, size = 0x4, scoped, tag = 'scoped memory for tpu_custom_call.1']
    #allocation13 [shape = 'u8[8192]{0}', space=vmem, size = 0x2000, scoped, tag = 'output window, operand 0']
    #allocation14 [shape = 'u8[8192]{0}', space=vmem, size = 0x2000, scoped, tag = 'output window, operand 1']
    #allocation15 [shape = 's32[2]{0}', space=sflag, size = 0x8, scoped, tag = 'scoped memory for tpu_custom_call.1']
    #allocation16 [shape = 'u8[8192]{0}', space=vmem, size = 0x2000, scoped, tag = 'output window, operand 2']
    #allocation17 [shape = 'u8[16384]{0}', space=vmem, size = 0x4000, scoped, tag = 'output window, operand 3']
    #allocation18 [shape = 's32[2]{0}', space=sflag, size = 0x8, scoped, tag = 'scoped memory for tpu_custom_call.1']
    %21 = vsyncpa [#allocation3], 0
    %s22 = scalar_lea.sflag [#allocation3], 1
    %23 = vsyncpa %s22, 0
    %24 = vsyncpa [#allocation6], 0
    %s25 = scalar_lea.sflag [#allocation6], 1
    %26 = vsyncpa %s25, 0
    %27 = vsyncpa [#allocation9], 0
    %28 = vsyncpa [#allocation12], 0
    %29 = vsyncpa [#allocation4], 0
    %s30 = scalar_lea.sflag [#allocation4], 1
    %31 = vsyncpa %s30, 0
    %32 = vsyncpa [#allocation15], 0
    %s33 = scalar_lea.sflag [#allocation15], 1
    %34 = vsyncpa %s33, 0
    %35 = vsyncpa [#allocation18], 0
    %s36 = scalar_lea.sflag [#allocation18], 1
    %37 = vsyncpa %s36, 0
    loop: start=0, step=1, limit=4
    $region2: #{tpu_custom_call.1} parent=1 // loop_pre_header
      _
    $region3: #{tpu_custom_call.1} parent=1 // loop_header
      %s39 = sphi 0, %s43
      %p40 = scmp.ge.s32.totalorder %s39, 4
      %s46 = sphi 0, %s58
      %s47 = sphi 0, %s54
      %s48 = sphi 0, %s46
      %s49 = sphi 0, %s47
      %s50 = sphi 0, %s48
      %s51 = sphi 0, %s49
      %s63 = sphi 0, %s65
      %s66 = sphi 0, %s63
      %s67 = sphi 0, %s66
      %s83 = sphi 0, %s67
      %s91 = sphi 0, %s93
      %s94 = sphi 0, %s91
      %s95 = sphi 0, %s94
      %s111 = sphi 0, %s95
      %s119 = sphi 0, %s121
      %s122 = sphi 0, %s119
      %s123 = sphi 0, %s122
      %s139 = sphi 0, %s123
      %s143 = sphi 0, %s143
      %s145 = sphi 0, %s143
      %s146 = sphi 0, %s145
      %s160 = sphi 0, %s146
      %s164 = sphi 0, %s164
      %s166 = sphi 0, %s164
      %s167 = sphi 0, %s166
      %s181 = sphi 0, %s167
      %s185 = sphi 0, %s185
      %s187 = sphi 0, %s185
      %s188 = sphi 0, %s187
      %s202 = sphi 0, %s188
      %s206 = sphi 0, %s206
      %s208 = sphi 0, %s206
      %s209 = sphi 0, %s208
      %s223 = sphi 0, %s209
      %s227 = sphi 0, %s227
      %s229 = sphi 0, %s227
      %s230 = sphi 0, %s229
      %s244 = sphi 0, %s230
      %s248 = sphi 0, %s248
      %s250 = sphi 0, %s248
      %s251 = sphi 0, %s250
      %s265 = sphi 0, %s251
      %s269 = sphi 0, %s269
      %s271 = sphi 0, %s269
      %s272 = sphi 0, %s271
      %s286 = sphi 0, %s272
      %s290 = sphi 0, %s290
      %s292 = sphi 0, %s290
      %s293 = sphi 0, %s292
      %s307 = sphi 0, %s293
      %s311 = sphi 0, %s311
      %s313 = sphi 0, %s311
      %s314 = sphi 0, %s313
      %s328 = sphi 0, %s314
      %s336 = sphi 0, %s338
      %s339 = sphi 0, %s336
      %s340 = sphi 0, %s339
      %s356 = sphi 0, %s340
      %s364 = sphi 0, %s366
      %s367 = sphi 0, %s364
      %s368 = sphi 0, %s367
      %s384 = sphi 0, %s368
      %s392 = sphi 0, %s394
      %s395 = sphi 0, %s392
      %s396 = sphi 0, %s395
      %s412 = sphi 0, %s396
      %s420 = sphi 0, %s422
      %s423 = sphi 0, %s420
      %s424 = sphi 0, %s423
      %s440 = sphi 0, %s424
    $region4: #{tpu_custom_call.1} parent=1 // loop_header_branch
      %42 = sbr.rel (%p40) target = $region8
    $region5: #{tpu_custom_call.1} parent=1 // loop_body
      %s44 = ssub.s32 %s39, 1
      %s45 = ssub.s32 %s39, 2
      %s52 = sadd.s32 1, %s47
      %p53 = scmp.ge.s32.totalorder %s52, 1
      %s54 = scalar_select %p53, 0, %s52
      %s55 = sadd.s32 1, %s46
      %s56 = scalar_select %p53, %s55, %s46
      %p57 = scmp.ge.s32.totalorder %s56, 2
      %s58 = scalar_select %p57, 0, %s56
      %s59 = ssub.s32 %s46, %s58
      %s60 = ssub.s32 %s47, %s54
      %s61 = sor.u32 %s59, %s60
      %p62 = scmp.eq.s32.totalorder %s61, 0
      %s64 = sadd.s32 %s63, 1
      %s65 = scalar_select %p62, %s63, %s64
      %p68 = pneg %p62
      %p69 = scmp.eq.s32.totalorder %s39, 1
      %p70 = por %p68, %p69
      %p71 = scmp.ne.s32.totalorder %s63, %s66
      %p72 = scmp.eq.s32.totalorder %s39, 0
      %p73 = por %p71, %p72
      %p74 = scmp.ne.s32.totalorder %s63, %s66
      %p75 = scmp.eq.s32.totalorder %s44, 1
      %p76 = por %p74, %p75
      %p77 = scmp.ne.s32.totalorder %s66, %s67
      %p78 = scmp.eq.s32.totalorder %s44, 0
      %p79 = por %p77, %p78
      %p80 = scmp.ne.s32.totalorder %s66, %s67
      %p81 = scmp.eq.s32.totalorder %s45, 1
      %p82 = por %p80, %p81
      %p84 = scmp.ne.s32.totalorder %s67, %s83
      %p85 = scmp.eq.s32.totalorder %s45, 0
      %p86 = por %p84, %p85
      %s87 = ssub.s32 %s46, %s58
      %s88 = ssub.s32 %s47, %s54
      %s89 = sor.u32 %s87, %s88
      %p90 = scmp.eq.s32.totalorder %s89, 0
      %s92 = sadd.s32 %s91, 1
      %s93 = scalar_select %p90, %s91, %s92
      %p96 = pneg %p90
      %p97 = scmp.eq.s32.totalorder %s39, 1
      %p98 = por %p96, %p97
      %p99 = scmp.ne.s32.totalorder %s91, %s94
      %p100 = scmp.eq.s32.totalorder %s39, 0
      %p101 = por %p99, %p100
      %p102 = scmp.ne.s32.totalorder %s91, %s94
      %p103 = scmp.eq.s32.totalorder %s44, 1
      %p104 = por %p102, %p103
      %p105 = scmp.ne.s32.totalorder %s94, %s95
      %p106 = scmp.eq.s32.totalorder %s44, 0
      %p107 = por %p105, %p106
      %p108 = scmp.ne.s32.totalorder %s94, %s95
      %p109 = scmp.eq.s32.totalorder %s45, 1
      %p110 = por %p108, %p109
      %p112 = scmp.ne.s32.totalorder %s95, %s111
      %p113 = scmp.eq.s32.totalorder %s45, 0
      %p114 = por %p112, %p113
      %s115 = ssub.s32 %s46, %s58
      %s116 = ssub.s32 %s47, %s54
      %s117 = sor.u32 %s115, %s116
      %p118 = scmp.eq.s32.totalorder %s117, 0
      %s120 = sadd.s32 %s119, 1
      %s121 = scalar_select %p118, %s119, %s120
      %p124 = pneg %p118
      %p125 = scmp.eq.s32.totalorder %s39, 1
      %p126 = por %p124, %p125
      %p127 = scmp.ne.s32.totalorder %s119, %s122
      %p128 = scmp.eq.s32.totalorder %s39, 0
      %p129 = por %p127, %p128
      %p130 = scmp.ne.s32.totalorder %s119, %s122
      %p131 = scmp.eq.s32.totalorder %s44, 1
      %p132 = por %p130, %p131
      %p133 = scmp.ne.s32.totalorder %s122, %s123
      %p134 = scmp.eq.s32.totalorder %s44, 0
      %p135 = por %p133, %p134
      %p136 = scmp.ne.s32.totalorder %s122, %s123
      %p137 = scmp.eq.s32.totalorder %s45, 1
      %p138 = por %p136, %p137
      %p140 = scmp.ne.s32.totalorder %s123, %s139
      %p141 = scmp.eq.s32.totalorder %s45, 0
      %p142 = por %p140, %p141
      %s144 = sadd.s32 %s143, 1
      %p147 = scmp.eq.s32.totalorder %s39, 1
      %p148 = scmp.ne.s32.totalorder %s143, %s145
      %p149 = scmp.eq.s32.totalorder %s39, 0
      %p150 = por %p148, %p149
      %p151 = scmp.ne.s32.totalorder %s143, %s145
      %p152 = scmp.eq.s32.totalorder %s44, 1
      %p153 = por %p151, %p152
      %p154 = scmp.ne.s32.totalorder %s145, %s146
      %p155 = scmp.eq.s32.totalorder %s44, 0
      %p156 = por %p154, %p155
      %p157 = scmp.ne.s32.totalorder %s145, %s146
      %p158 = scmp.eq.s32.totalorder %s45, 1
      %p159 = por %p157, %p158
      %p161 = scmp.ne.s32.totalorder %s146, %s160
      %p162 = scmp.eq.s32.totalorder %s45, 0
      %p163 = por %p161, %p162
      %s165 = sadd.s32 %s164, 1
      %p168 = scmp.eq.s32.totalorder %s39, 1
      %p169 = scmp.ne.s32.totalorder %s164, %s166
      %p170 = scmp.eq.s32.totalorder %s39, 0
      %p171 = por %p169, %p170
      %p172 = scmp.ne.s32.totalorder %s164, %s166
      %p173 = scmp.eq.s32.totalorder %s44, 1
      %p174 = por %p172, %p173
      %p175 = scmp.ne.s32.totalorder %s166, %s167
      %p176 = scmp.eq.s32.totalorder %s44, 0
      %p177 = por %p175, %p176
      %p178 = scmp.ne.s32.totalorder %s166, %s167
      %p179 = scmp.eq.s32.totalorder %s45, 1
      %p180 = por %p178, %p179
      %p182 = scmp.ne.s32.totalorder %s167, %s181
      %p183 = scmp.eq.s32.totalorder %s45, 0
      %p184 = por %p182, %p183
      %s186 = sadd.s32 %s185, 1
      %p189 = scmp.eq.s32.totalorder %s39, 1
      %p190 = scmp.ne.s32.totalorder %s185, %s187
      %p191 = scmp.eq.s32.totalorder %s39, 0
      %p192 = por %p190, %p191
      %p193 = scmp.ne.s32.totalorder %s185, %s187
      %p194 = scmp.eq.s32.totalorder %s44, 1
      %p195 = por %p193, %p194
      %p196 = scmp.ne.s32.totalorder %s187, %s188
      %p197 = scmp.eq.s32.totalorder %s44, 0
      %p198 = por %p196, %p197
      %p199 = scmp.ne.s32.totalorder %s187, %s188
      %p200 = scmp.eq.s32.totalorder %s45, 1
      %p201 = por %p199, %p200
      %p203 = scmp.ne.s32.totalorder %s188, %s202
      %p204 = scmp.eq.s32.totalorder %s45, 0
      %p205 = por %p203, %p204
      %s207 = sadd.s32 %s206, 1
      %p210 = scmp.eq.s32.totalorder %s39, 1
      %p211 = scmp.ne.s32.totalorder %s206, %s208
      %p212 = scmp.eq.s32.totalorder %s39, 0
      %p213 = por %p211, %p212
      %p214 = scmp.ne.s32.totalorder %s206, %s208
      %p215 = scmp.eq.s32.totalorder %s44, 1
      %p216 = por %p214, %p215
      %p217 = scmp.ne.s32.totalorder %s208, %s209
      %p218 = scmp.eq.s32.totalorder %s44, 0
      %p219 = por %p217, %p218
      %p220 = scmp.ne.s32.totalorder %s208, %s209
      %p221 = scmp.eq.s32.totalorder %s45, 1
      %p222 = por %p220, %p221
      %p224 = scmp.ne.s32.totalorder %s209, %s223
      %p225 = scmp.eq.s32.totalorder %s45, 0
      %p226 = por %p224, %p225
      %s228 = sadd.s32 %s227, 1
      %p231 = scmp.eq.s32.totalorder %s39, 1
      %p232 = scmp.ne.s32.totalorder %s227, %s229
      %p233 = scmp.eq.s32.totalorder %s39, 0
      %p234 = por %p232, %p233
      %p235 = scmp.ne.s32.totalorder %s227, %s229
      %p236 = scmp.eq.s32.totalorder %s44, 1
      %p237 = por %p235, %p236
      %p238 = scmp.ne.s32.totalorder %s229, %s230
      %p239 = scmp.eq.s32.totalorder %s44, 0
      %p240 = por %p238, %p239
      %p241 = scmp.ne.s32.totalorder %s229, %s230
      %p242 = scmp.eq.s32.totalorder %s45, 1
      %p243 = por %p241, %p242
      %p245 = scmp.ne.s32.totalorder %s230, %s244
      %p246 = scmp.eq.s32.totalorder %s45, 0
      %p247 = por %p245, %p246
      %s249 = sadd.s32 %s248, 1
      %p252 = scmp.eq.s32.totalorder %s39, 1
      %p253 = scmp.ne.s32.totalorder %s248, %s250
      %p254 = scmp.eq.s32.totalorder %s39, 0
      %p255 = por %p253, %p254
      %p256 = scmp.ne.s32.totalorder %s248, %s250
      %p257 = scmp.eq.s32.totalorder %s44, 1
      %p258 = por %p256, %p257
      %p259 = scmp.ne.s32.totalorder %s250, %s251
      %p260 = scmp.eq.s32.totalorder %s44, 0
      %p261 = por %p259, %p260
      %p262 = scmp.ne.s32.totalorder %s250, %s251
      %p263 = scmp.eq.s32.totalorder %s45, 1
      %p264 = por %p262, %p263
      %p266 = scmp.ne.s32.totalorder %s251, %s265
      %p267 = scmp.eq.s32.totalorder %s45, 0
      %p268 = por %p266, %p267
      %s270 = sadd.s32 %s269, 1
      %p273 = scmp.eq.s32.totalorder %s39, 1
      %p274 = scmp.ne.s32.totalorder %s269, %s271
      %p275 = scmp.eq.s32.totalorder %s39, 0
      %p276 = por %p274, %p275
      %p277 = scmp.ne.s32.totalorder %s269, %s271
      %p278 = scmp.eq.s32.totalorder %s44, 1
      %p279 = por %p277, %p278
      %p280 = scmp.ne.s32.totalorder %s271, %s272
      %p281 = scmp.eq.s32.totalorder %s44, 0
      %p282 = por %p280, %p281
      %p283 = scmp.ne.s32.totalorder %s271, %s272
      %p284 = scmp.eq.s32.totalorder %s45, 1
      %p285 = por %p283, %p284
      %p287 = scmp.ne.s32.totalorder %s272, %s286
      %p288 = scmp.eq.s32.totalorder %s45, 0
      %p289 = por %p287, %p288
      %s291 = sadd.s32 %s290, 1
      %p294 = scmp.eq.s32.totalorder %s39, 1
      %p295 = scmp.ne.s32.totalorder %s290, %s292
      %p296 = scmp.eq.s32.totalorder %s39, 0
      %p297 = por %p295, %p296
      %p298 = scmp.ne.s32.totalorder %s290, %s292
      %p299 = scmp.eq.s32.totalorder %s44, 1
      %p300 = por %p298, %p299
      %p301 = scmp.ne.s32.totalorder %s292, %s293
      %p302 = scmp.eq.s32.totalorder %s44, 0
      %p303 = por %p301, %p302
      %p304 = scmp.ne.s32.totalorder %s292, %s293
      %p305 = scmp.eq.s32.totalorder %s45, 1
      %p306 = por %p304, %p305
      %p308 = scmp.ne.s32.totalorder %s293, %s307
      %p309 = scmp.eq.s32.totalorder %s45, 0
      %p310 = por %p308, %p309
      %s312 = sadd.s32 %s311, 1
      %p315 = scmp.eq.s32.totalorder %s39, 1
      %p316 = scmp.ne.s32.totalorder %s311, %s313
      %p317 = scmp.eq.s32.totalorder %s39, 0
      %p318 = por %p316, %p317
      %p319 = scmp.ne.s32.totalorder %s311, %s313
      %p320 = scmp.eq.s32.totalorder %s44, 1
      %p321 = por %p319, %p320
      %p322 = scmp.ne.s32.totalorder %s313, %s314
      %p323 = scmp.eq.s32.totalorder %s44, 0
      %p324 = por %p322, %p323
      %p325 = scmp.ne.s32.totalorder %s313, %s314
      %p326 = scmp.eq.s32.totalorder %s45, 1
      %p327 = por %p325, %p326
      %p329 = scmp.ne.s32.totalorder %s314, %s328
      %p330 = scmp.eq.s32.totalorder %s45, 0
      %p331 = por %p329, %p330
      %s332 = ssub.s32 %s46, %s58
      %s333 = ssub.s32 %s47, %s54
      %s334 = sor.u32 %s332, %s333
      %p335 = scmp.eq.s32.totalorder %s334, 0
      %s337 = sadd.s32 %s336, 1
      %s338 = scalar_select %p335, %s336, %s337
      %p341 = pneg %p335
      %p342 = scmp.eq.s32.totalorder %s39, 1
      %p343 = por %p341, %p342
      %p344 = scmp.ne.s32.totalorder %s336, %s339
      %p345 = scmp.eq.s32.totalorder %s39, 0
      %p346 = por %p344, %p345
      %p347 = scmp.ne.s32.totalorder %s336, %s339
      %p348 = scmp.eq.s32.totalorder %s44, 1
      %p349 = por %p347, %p348
      %p350 = scmp.ne.s32.totalorder %s339, %s340
      %p351 = scmp.eq.s32.totalorder %s44, 0
      %p352 = por %p350, %p351
      %p353 = scmp.ne.s32.totalorder %s339, %s340
      %p354 = scmp.eq.s32.totalorder %s45, 1
      %p355 = por %p353, %p354
      %p357 = scmp.ne.s32.totalorder %s340, %s356
      %p358 = scmp.eq.s32.totalorder %s45, 0
      %p359 = por %p357, %p358
      %s360 = ssub.s32 %s46, %s58
      %s361 = ssub.s32 %s47, %s54
      %s362 = sor.u32 %s360, %s361
      %p363 = scmp.eq.s32.totalorder %s362, 0
      %s365 = sadd.s32 %s364, 1
      %s366 = scalar_select %p363, %s364, %s365
      %p369 = pneg %p363
      %p370 = scmp.eq.s32.totalorder %s39, 1
      %p371 = por %p369, %p370
      %p372 = scmp.ne.s32.totalorder %s364, %s367
      %p373 = scmp.eq.s32.totalorder %s39, 0
      %p374 = por %p372, %p373
      %p375 = scmp.ne.s32.totalorder %s364, %s367
      %p376 = scmp.eq.s32.totalorder %s44, 1
      %p377 = por %p375, %p376
      %p378 = scmp.ne.s32.totalorder %s367, %s368
      %p379 = scmp.eq.s32.totalorder %s44, 0
      %p380 = por %p378, %p379
      %p381 = scmp.ne.s32.totalorder %s367, %s368
      %p382 = scmp.eq.s32.totalorder %s45, 1
      %p383 = por %p381, %p382
      %p385 = scmp.ne.s32.totalorder %s368, %s384
      %p386 = scmp.eq.s32.totalorder %s45, 0
      %p387 = por %p385, %p386
      %s388 = ssub.s32 %s46, %s58
      %s389 = ssub.s32 %s47, %s54
      %s390 = sor.u32 %s388, %s389
      %p391 = scmp.eq.s32.totalorder %s390, 0
      %s393 = sadd.s32 %s392, 1
      %s394 = scalar_select %p391, %s392, %s393
      %p397 = pneg %p391
      %p398 = scmp.eq.s32.totalorder %s39, 1
      %p399 = por %p397, %p398
      %p400 = scmp.ne.s32.totalorder %s392, %s395
      %p401 = scmp.eq.s32.totalorder %s39, 0
      %p402 = por %p400, %p401
      %p403 = scmp.ne.s32.totalorder %s392, %s395
      %p404 = scmp.eq.s32.totalorder %s44, 1
      %p405 = por %p403, %p404
      %p406 = scmp.ne.s32.totalorder %s395, %s396
      %p407 = scmp.eq.s32.totalorder %s44, 0
      %p408 = por %p406, %p407
      %p409 = scmp.ne.s32.totalorder %s395, %s396
      %p410 = scmp.eq.s32.totalorder %s45, 1
      %p411 = por %p409, %p410
      %p413 = scmp.ne.s32.totalorder %s396, %s412
      %p414 = scmp.eq.s32.totalorder %s45, 0
      %p415 = por %p413, %p414
      %s416 = ssub.s32 %s46, %s58
      %s417 = ssub.s32 %s47, %s54
      %s418 = sor.u32 %s416, %s417
      %p419 = scmp.eq.s32.totalorder %s418, 0
      %s421 = sadd.s32 %s420, 1
      %s422 = scalar_select %p419, %s420, %s421
      %p425 = pneg %p419
      %p426 = scmp.eq.s32.totalorder %s39, 1
      %p427 = por %p425, %p426
      %p428 = scmp.ne.s32.totalorder %s420, %s423
      %p429 = scmp.eq.s32.totalorder %s39, 0
      %p430 = por %p428, %p429
      %p431 = scmp.ne.s32.totalorder %s420, %s423
      %p432 = scmp.eq.s32.totalorder %s44, 1
      %p433 = por %p431, %p432
      %p434 = scmp.ne.s32.totalorder %s423, %s424
      %p435 = scmp.eq.s32.totalorder %s44, 0
      %p436 = por %p434, %p435
      %p437 = scmp.ne.s32.totalorder %s423, %s424
      %p438 = scmp.eq.s32.totalorder %s45, 1
      %p439 = por %p437, %p438
      %p441 = scmp.ne.s32.totalorder %s424, %s440
      %p442 = scmp.eq.s32.totalorder %s45, 0
      %p443 = por %p441, %p442
      %p444 = scmp.le.s32.totalorder 1, %s39
      %p445 = scmp.lt.s32.totalorder %s39, 3
      %p446 = pnand %p444, %p445
      %p447 = pneg %p446
      // Predicated region
      $region9: #{tpu_custom_call.1} parent=5 // pred_check
        _
      $region10: #{tpu_custom_call.1} parent=5 // pred_check_branch
        %449 = sbr.rel (%p446) target = $region12
      $region11: #{tpu_custom_call.1} parent=5 // pred_region
        %s450 = ssub.s32 %s39, 1
        // Predicated region
        $region13: #{tpu_custom_call.1} parent=11 // pred_check
          %p451 = pneg %p156
        $region14: #{tpu_custom_call.1} parent=11 // pred_check_branch
          %453 = sbr.rel (%p451) target = $region16
        $region15: #{tpu_custom_call.1} parent=11 // pred_region
          _
        $region16: #{tpu_custom_call.1} parent=11 // pred_fallthru
          _
        // Predicated region
        $region17: #{tpu_custom_call.1} parent=11 // pred_check
          %p454 = pneg %p177
        $region18: #{tpu_custom_call.1} parent=11 // pred_check_branch
          %456 = sbr.rel (%p454) target = $region20
        $region19: #{tpu_custom_call.1} parent=11 // pred_region
          _
        $region20: #{tpu_custom_call.1} parent=11 // pred_fallthru
          _
        // Predicated region
        $region21: #{tpu_custom_call.1} parent=11 // pred_check
          %p457 = pneg %p198
        $region22: #{tpu_custom_call.1} parent=11 // pred_check_branch
          %459 = sbr.rel (%p457) target = $region24
        $region23: #{tpu_custom_call.1} parent=11 // pred_region
          %s461 = ssub.s32 512, 512
          %462 = vsyncadd [#allocation9], %s461
          %s463 = sshll.u32 [#allocation8], 4
          %s464 = int_to_ptr.vmem [resolvable:$true] %s463
          %469 = dma.hbm_to_vmem [thread:$0]  %s5, 512, %s464, [#allocation9], 128, 128, 8
        $region24: #{tpu_custom_call.1} parent=11 // pred_fallthru
          _
        // Predicated region
        $region25: #{tpu_custom_call.1} parent=11 // pred_check
          %p470 = pneg %p219
        $region26: #{tpu_custom_call.1} parent=11 // pred_check_branch
          %472 = sbr.rel (%p470) target = $region28
        $region27: #{tpu_custom_call.1} parent=11 // pred_region
          %s474 = ssub.s32 512, 512
          %475 = vsyncadd [#allocation9], %s474
          %s476 = sshll.u32 [#allocation10], 4
          %s477 = int_to_ptr.vmem [resolvable:$true] %s476
          %482 = dma.hbm_to_vmem [thread:$0]  %s6, 512, %s477, [#allocation9], 128, 128, 8
        $region28: #{tpu_custom_call.1} parent=11 // pred_fallthru
          _
        // Predicated region
        $region29: #{tpu_custom_call.1} parent=11 // pred_check
          %p483 = pneg %p240
        $region30: #{tpu_custom_call.1} parent=11 // pred_check_branch
          %485 = sbr.rel (%p483) target = $region32
        $region31: #{tpu_custom_call.1} parent=11 // pred_region
          _
        $region32: #{tpu_custom_call.1} parent=11 // pred_fallthru
          _
        // Predicated region
        $region33: #{tpu_custom_call.1} parent=11 // pred_check
          %p486 = pneg %p261
        $region34: #{tpu_custom_call.1} parent=11 // pred_check_branch
          %488 = sbr.rel (%p486) target = $region36
        $region35: #{tpu_custom_call.1} parent=11 // pred_region
          %s490 = ssub.s32 768, 768
          %491 = vsyncadd [#allocation12], %s490
          %s492 = sshll.u32 [#allocation11], 4
          %s493 = int_to_ptr.vmem [resolvable:$true] %s492
          %498 = dma.hbm_to_vmem [thread:$0]  %s8, 768, %s493, [#allocation12], 256, 256, 16
        $region36: #{tpu_custom_call.1} parent=11 // pred_fallthru
          _
        // Predicated region
        $region37: #{tpu_custom_call.1} parent=11 // pred_check
          %p499 = pneg %p282
        $region38: #{tpu_custom_call.1} parent=11 // pred_check_branch
          %501 = sbr.rel (%p499) target = $region40
        $region39: #{tpu_custom_call.1} parent=11 // pred_region
          _
        $region40: #{tpu_custom_call.1} parent=11 // pred_fallthru
          _
        // Predicated region
        $region41: #{tpu_custom_call.1} parent=11 // pred_check
          %p502 = pneg %p303
        $region42: #{tpu_custom_call.1} parent=11 // pred_check_branch
          %504 = sbr.rel (%p502) target = $region44
        $region43: #{tpu_custom_call.1} parent=11 // pred_region
          _
        $region44: #{tpu_custom_call.1} parent=11 // pred_fallthru
          _
        // Predicated region
        $region45: #{tpu_custom_call.1} parent=11 // pred_check
          %p505 = pneg %p324
        $region46: #{tpu_custom_call.1} parent=11 // pred_check_branch
          %507 = sbr.rel (%p505) target = $region48
        $region47: #{tpu_custom_call.1} parent=11 // pred_region
          _
        $region48: #{tpu_custom_call.1} parent=11 // pred_fallthru
          _
      $region12: #{tpu_custom_call.1} parent=5 // pred_fallthru
        _
      %p508 = scmp.lt.s32.totalorder %s39, 2
      // Predicated region
      $region49: #{tpu_custom_call.1} parent=5 // pred_check
        %p509 = pneg %p508
      $region50: #{tpu_custom_call.1} parent=5 // pred_check_branch
        %511 = sbr.rel (%p509) target = $region52
      $region51: #{tpu_custom_call.1} parent=5 // pred_region
        // Predicated region
        $region53: #{tpu_custom_call.1} parent=51 // pred_check
          %p512 = pneg %p73
        $region54: #{tpu_custom_call.1} parent=51 // pred_check_branch
          %514 = sbr.rel (%p512) target = $region56
        $region55: #{tpu_custom_call.1} parent=51 // pred_region
          %s515 = sand.u32 %s63, 1
          %s516 = scalar_lea.sflag [#allocation3], %s515
          %s517 = sand.u32 %s63, 1
          %s518 = smul.addr %s517, 8
          %s519 = scalar_lea.vmem [#allocation2], %s518
          %s521 = ssub.s32 128, 128
          %522 = vsyncadd %s516, %s521
          %s523 = sadd.s32 %s47, %s46
          %s524 = smul.addr %s523, 128
          %s525 = scalar_lea.hbm %s0, %s524
          %s527 = sshll.u32 %s519, 4
          %s528 = int_to_ptr.vmem [resolvable:$true] %s527
          %530 = dma.hbm_to_vmem [thread:$0]  %s525, 128, %s528, %s516
        $region56: #{tpu_custom_call.1} parent=51 // pred_fallthru
          _
        // Predicated region
        $region57: #{tpu_custom_call.1} parent=51 // pred_check
          %p531 = pneg %p101
        $region58: #{tpu_custom_call.1} parent=51 // pred_check_branch
          %533 = sbr.rel (%p531) target = $region60
        $region59: #{tpu_custom_call.1} parent=51 // pred_region
          %s534 = sand.u32 %s39, 1
          %s535 = scalar_lea.sflag [#allocation6], %s534
          %s536 = sand.u32 %s91, 1
          %s537 = smul.addr %s536, 8
          %s538 = scalar_lea.vmem [#allocation5], %s537
          %s540 = ssub.s32 128, 128
          %541 = vsyncadd %s535, %s540
          %s542 = sadd.s32 %s47, %s46
          %s543 = smul.addr %s542, 128
          %s544 = scalar_lea.hbm %s1, %s543
          %s546 = sshll.u32 %s538, 4
          %s547 = int_to_ptr.vmem [resolvable:$true] %s546
          %549 = dma.hbm_to_vmem [thread:$0]  %s544, 128, %s547, %s535
        $region60: #{tpu_custom_call.1} parent=51 // pred_fallthru
          _
        // Predicated region
        $region61: #{tpu_custom_call.1} parent=51 // pred_check
          %p550 = pneg %p129
        $region62: #{tpu_custom_call.1} parent=51 // pred_check_branch
          %552 = sbr.rel (%p550) target = $region64
        $region63: #{tpu_custom_call.1} parent=51 // pred_region
          %s553 = sand.u32 %s39, 1
          %s554 = scalar_lea.sflag [#allocation6], %s553
          %s555 = sand.u32 %s119, 1
          %s556 = smul.addr %s555, 16
          %s557 = scalar_lea.vmem [#allocation7], %s556
          %s559 = ssub.s32 256, 256
          %560 = vsyncadd %s554, %s559
          %s561 = smul.addr %s47, 2
          %s562 = smul.addr %s46, 2
          %s563 = sadd.s32 %s561, %s562
          %s564 = smul.addr %s563, 128
          %s565 = scalar_lea.hbm %s2, %s564
          %s567 = sshll.u32 %s557, 4
          %s568 = int_to_ptr.vmem [resolvable:$true] %s567
          %570 = dma.hbm_to_vmem [thread:$0]  %s565, 256, %s568, %s554
        $region64: #{tpu_custom_call.1} parent=51 // pred_fallthru
          _
      $region52: #{tpu_custom_call.1} parent=5 // pred_fallthru
        _
      %p571 = scmp.le.s32.totalorder 1, %s39
      %p572 = scmp.lt.s32.totalorder %s39, 3
      %p573 = pnand %p571, %p572
      %p574 = pneg %p573
      // Predicated region
      $region65: #{tpu_custom_call.1} parent=5 // pred_check
        _
      $region66: #{tpu_custom_call.1} parent=5 // pred_check_branch
        %576 = sbr.rel (%p573) target = $region68
      $region67: #{tpu_custom_call.1} parent=5 // pred_region
        %s577 = ssub.s32 %s39, 1
        %s578 = sand.u32 %s66, 1
        %s579 = scalar_lea.sflag [#allocation3], %s578
        %s580 = sand.u32 %s66, 1
        %s581 = smul.addr %s580, 8
        %s582 = scalar_lea.vmem [#allocation2], %s581
        // Predicated region
        $region69: #{tpu_custom_call.1} parent=67 // pred_check
          %p583 = pneg %p79
        $region70: #{tpu_custom_call.1} parent=67 // pred_check_branch
          %585 = sbr.rel (%p583) target = $region72
        $region71: #{tpu_custom_call.1} parent=67 // pred_region
          %586 = dma.done %s579, 128
        $region72: #{tpu_custom_call.1} parent=67 // pred_fallthru
          _
        %s587 = sand.u32 %s44, 1
        %s588 = scalar_lea.sflag [#allocation6], %s587
        %s589 = sand.u32 %s94, 1
        %s590 = smul.addr %s589, 8
        %s591 = scalar_lea.vmem [#allocation5], %s590
        // Predicated region
        $region73: #{tpu_custom_call.1} parent=67 // pred_check
          %p592 = pneg %p107
        $region74: #{tpu_custom_call.1} parent=67 // pred_check_branch
          %594 = sbr.rel (%p592) target = $region76
        $region75: #{tpu_custom_call.1} parent=67 // pred_region
          %595 = dma.done %s588, 128
        $region76: #{tpu_custom_call.1} parent=67 // pred_fallthru
          _
        %s596 = sand.u32 %s44, 1
        %s597 = scalar_lea.sflag [#allocation6], %s596
        %s598 = sand.u32 %s122, 1
        %s599 = smul.addr %s598, 16
        %s600 = scalar_lea.vmem [#allocation7], %s599
        // Predicated region
        $region77: #{tpu_custom_call.1} parent=67 // pred_check
          %p601 = pneg %p135
        $region78: #{tpu_custom_call.1} parent=67 // pred_check_branch
          %603 = sbr.rel (%p601) target = $region80
        $region79: #{tpu_custom_call.1} parent=67 // pred_region
          %604 = dma.done %s597, 256
        $region80: #{tpu_custom_call.1} parent=67 // pred_fallthru
          _
        // Predicated region
        $region81: #{tpu_custom_call.1} parent=67 // pred_check
          %p605 = pneg %p198
        $region82: #{tpu_custom_call.1} parent=67 // pred_check_branch
          %607 = sbr.rel (%p605) target = $region84
        $region83: #{tpu_custom_call.1} parent=67 // pred_region
          %608 = dma.done [#allocation9], 512
        $region84: #{tpu_custom_call.1} parent=67 // pred_fallthru
          _
        // Predicated region
        $region85: #{tpu_custom_call.1} parent=67 // pred_check
          %p609 = pneg %p219
        $region86: #{tpu_custom_call.1} parent=67 // pred_check_branch
          %611 = sbr.rel (%p609) target = $region88
        $region87: #{tpu_custom_call.1} parent=67 // pred_region
          %612 = dma.done [#allocation9], 512
        $region88: #{tpu_custom_call.1} parent=67 // pred_fallthru
          _
        // Predicated region
        $region89: #{tpu_custom_call.1} parent=67 // pred_check
          %p613 = pneg %p261
        $region90: #{tpu_custom_call.1} parent=67 // pred_check_branch
          %615 = sbr.rel (%p613) target = $region92
        $region91: #{tpu_custom_call.1} parent=67 // pred_region
          %616 = dma.done [#allocation12], 768
        $region92: #{tpu_custom_call.1} parent=67 // pred_fallthru
          _
        %s617 = sand.u32 %s66, 1
        %s618 = scalar_lea.sflag [#allocation3], %s617
        %s619 = sand.u32 %s66, 1
        %s620 = smul.addr %s619, 8
        %s621 = scalar_lea.vmem [#allocation2], %s620
        %p622 = pneg %p79
        %p623 = pneg %p76
        %s624 = sand.u32 %s44, 1
        %s625 = scalar_lea.sflag [#allocation6], %s624
        %s626 = sand.u32 %s94, 1
        %s627 = smul.addr %s626, 8
        %s628 = scalar_lea.vmem [#allocation5], %s627
        %p629 = pneg %p107
        %p630 = pneg %p104
        %s631 = sand.u32 %s44, 1
        %s632 = scalar_lea.sflag [#allocation6], %s631
        %s633 = sand.u32 %s122, 1
        %s634 = smul.addr %s633, 16
        %s635 = scalar_lea.vmem [#allocation7], %s634
        %p636 = pneg %p135
        %p637 = pneg %p132
        %p638 = pneg %p156
        %p639 = pneg %p153
        %p640 = pneg %p177
        %p641 = pneg %p174
        %p642 = pneg %p198
        %p643 = pneg %p195
        %p644 = pneg %p219
        %p645 = pneg %p216
        %p646 = pneg %p240
        %p647 = pneg %p237
        %p648 = pneg %p261
        %p649 = pneg %p258
        %p650 = pneg %p282
        %p651 = pneg %p279
        %p652 = pneg %p303
        %p653 = pneg %p300
        %p654 = pneg %p324
        %p655 = pneg %p321
        %p656 = pneg %p352
        %p657 = pneg %p349
        %s658 = sand.u32 %s339, 1
        %s659 = scalar_lea.sflag [#allocation4], %s658
        %s660 = sand.u32 %s339, 1
        %s661 = smul.addr %s660, 8
        %s662 = scalar_lea.vmem [#allocation13], %s661
        %p663 = pneg %p380
        %p664 = pneg %p377
        %s665 = sand.u32 %s44, 1
        %s666 = scalar_lea.sflag [#allocation15], %s665
        %s667 = sand.u32 %s367, 1
        %s668 = smul.addr %s667, 8
        %s669 = scalar_lea.vmem [#allocation14], %s668
        %p670 = pneg %p408
        %p671 = pneg %p405
        %s672 = sand.u32 %s44, 1
        %s673 = scalar_lea.sflag [#allocation15], %s672
        %s674 = sand.u32 %s395, 1
        %s675 = smul.addr %s674, 8
        %s676 = scalar_lea.vmem [#allocation16], %s675
        %p677 = pneg %p436
        %p678 = pneg %p433
        %s679 = sand.u32 %s423, 1
        %s680 = scalar_lea.sflag [#allocation18], %s679
        %s681 = sand.u32 %s423, 1
        %s682 = smul.addr %s681, 16
        %s683 = scalar_lea.vmem [#allocation17], %s682
        %v684 = vld [vmem:[%s582] sm:$0xff]
        %v685 = vld [vmem:[%s3] sm:$0x1]
        %v686 = vld [vmem:[%s4] sm:$0x1]
        %vm687 = vcmask 261120
        %v688 = vsel %vm687, %v684, 0.0
        %689 = vadd.xlane.f32.xlu0 %v688
        %v690 = vpop.xlane.xlu0 %689
        %v691 = vrcp.pop 32.0
        %v692 = vmul.f32 %v690, %v691
        %v693 = vsub.f32 %v684, %v692
        %v694 = vmul.f32 %v693, %v693
        %v695 = vsel %vm687, %v694, 0.0
        %696 = vadd.xlane.f32.xlu0 %v695
        %v697 = vpop.xlane.xlu0 %696
        %v698 = vmul.f32 %v697, %v691
        %v699 = vadd.f32 %v698, 1e-05
        %v700 = vrsqrt.pop %v699
        %v701 = vmul.f32 %v693, %v700
        %v703 = vlaneseq
        %v704 = vshrl.u32 %v703, 7
        %v705 = vsub.s32 0, %v704
        %v706 = vrot.slane %v685, %v705
        %v708 = vmul.f32 %v701, %v706
        %v710 = vlaneseq
        %v711 = vshrl.u32 %v710, 7
        %v712 = vsub.s32 0, %v711
        %v713 = vrot.slane %v686, %v712
        %v715 = vadd.f32 %v708, %v713
        %716 = vst.msk [vmem:[%s662] sm:$0xff] %vm687, %v715
        %v717 = vld [vmem:[#allocation8] sm:$0xff]
        %v718 = vld [vmem:[#allocation8 + $0x8] sm:$0xff]
        %v719 = vld [vmem:[#allocation8 + $0x10] sm:$0xff]
        %v720 = vld [vmem:[#allocation8 + $0x18] sm:$0xff]
        %v721 = vld [vmem:[%s7] sm:$0x1]
        %v723 = vlaneseq
        %v724 = vshrl.u32 %v723, 7
        %v725 = vsub.s32 0, %v724
        %v726 = vrot.slane %v721, %v725
        %v729 = vsel %vm687, %v715, 0
        %731 = vmatprep.subr.mxu0 0.0
        %732 = vmatpush1.msra.mxu0 %v717
        %733 = vmatprep.subr.mxu0 0.0
        %734 = vmatpush1.msra.mxu0 %v718
        %735 = vmatprep.subr.mxu0 0.0
        %736 = vmatpush1.msra.mxu0 %v719
        %737 = vmatprep.subr.mxu0 0.0
        %738 = vmatpush1.msra.mxu0 %v720
        %739 = vmatprep.subr.mxu0 0.0
        %740 = vmatpush1.msra.mxu0 0.0
        %741 = vmatprep.subr.mxu0 0.0
        %742 = vmatpush1.msra.mxu0 0.0
        %743 = vmatprep.subr.mxu0 0.0
        %744 = vmatpush1.msra.mxu0 0.0
        %745 = vmatprep.subr.mxu0 0.0
        %746 = vmatpush1.msra.mxu0 0.0
        %747 = vmatprep.subr.mxu0 0.0
        %748 = vmatpush1.msra.mxu0 0.0
        %749 = vmatprep.subr.mxu0 0.0
        %750 = vmatpush1.msra.mxu0 0.0
        %751 = vmatprep.subr.mxu0 0.0
        %752 = vmatpush1.msra.mxu0 0.0
        %753 = vmatprep.subr.mxu0 0.0
        %754 = vmatpush1.msra.mxu0 0.0
        %755 = vmatprep.subr.mxu0 0.0
        %756 = vmatpush1.msra.mxu0 0.0
        %757 = vmatprep.subr.mxu0 0.0
        %758 = vmatpush1.msra.mxu0 0.0
        %759 = vmatprep.subr.mxu0 0.0
        %760 = vmatpush1.msra.mxu0 0.0
        %761 = vmatprep.subr.mxu0 0.0
        %762 = vmatpush1.msra.mxu0 0.0
        %763 = vmatprep.subr.mxu0 0.0
        %764 = vmatpush1.msra.mxu0 0.0
        %765 = vmatprep.subr.mxu0 0.0
        %766 = vmatpush1.msra.mxu0 0.0
        %767 = vmatprep.subr.mxu0 0.0
        %768 = vmatpush1.msra.mxu0 0.0
        %769 = vmatprep.subr.mxu0 0.0
        %770 = vmatpush1.msra.mxu0 0.0
        %771 = vmatprep.subr.mxu0 0.0
        %772 = vmatpush1.msra.mxu0 0.0
        %773 = vmatprep.subr.mxu0 0.0
        %774 = vmatpush1.msra.mxu0 0.0
        %775 = vmatprep.subr.mxu0 0.0
        %776 = vmatpush1.msra.mxu0 0.0
        %777 = vmatprep.subr.mxu0 0.0
        %778 = vmatpush1.msra.mxu0 0.0
        %779 = vmatprep.subr.mxu0 0.0
        %780 = vmatpush1.msra.mxu0 0.0
        %781 = vmatprep.subr.mxu0 0.0
        %782 = vmatpush1.msra.mxu0 0.0
        %783 = vmatprep.subr.mxu0 0.0
        %784 = vmatpush1.msra.mxu0 0.0
        %785 = vmatprep.subr.mxu0 0.0
        %786 = vmatpush1.msra.mxu0 0.0
        %787 = vmatprep.subr.mxu0 0.0
        %788 = vmatpush1.msra.mxu0 0.0
        %789 = vmatprep.subr.mxu0 0.0
        %790 = vmatpush1.msra.mxu0 0.0
        %791 = vmatprep.subr.mxu0 0.0
        %792 = vmatpush1.msra.mxu0 0.0
        %793 = vmatprep.subr.mxu0 0.0
        %794 = vmatpush1.msra.mxu0 0.0
        %795 = vmatprep.mubr.f32.mxu0 0.0
        %796 = vmatmul.mubr.f32.gmra.mrb[0].mxu0 %v729
        %v797 = vpop.f32.mrb[0].mxu0
        %v798 = vadd.f32 %v726, %v797
        %v799 = vpop.f32.mrb[0].mxu0
        %800 = vdwg.mxu0
        %801 = vst [vmem:[%s669] sm:$0xff] %v798
        %v802 = vld [vmem:[#allocation10] sm:$0xff]
        %v803 = vld [vmem:[#allocation10 + $0x8] sm:$0xff]
        %v804 = vld [vmem:[#allocation10 + $0x10] sm:$0xff]
        %v805 = vld [vmem:[#allocation10 + $0x18] sm:$0xff]
        %806 = vmatprep.subr.mxu0 0.0
        %807 = vmatpush1.msra.mxu0 %v802
        %808 = vmatprep.subr.mxu0 0.0
        %809 = vmatpush1.msra.mxu0 %v803
        %810 = vmatprep.subr.mxu0 0.0
        %811 = vmatpush1.msra.mxu0 %v804
        %812 = vmatprep.subr.mxu0 0.0
        %813 = vmatpush1.msra.mxu0 %v805
        %814 = vmatprep.subr.mxu0 0.0
        %815 = vmatpush1.msra.mxu0 0.0
        %816 = vmatprep.subr.mxu0 0.0
        %817 = vmatpush1.msra.mxu0 0.0
        %818 = vmatprep.subr.mxu0 0.0
        %819 = vmatpush1.msra.mxu0 0.0
        %820 = vmatprep.subr.mxu0 0.0
        %821 = vmatpush1.msra.mxu0 0.0
        %822 = vmatprep.subr.mxu0 0.0
        %823 = vmatpush1.msra.mxu0 0.0
        %824 = vmatprep.subr.mxu0 0.0
        %825 = vmatpush1.msra.mxu0 0.0
        %826 = vmatprep.subr.mxu0 0.0
        %827 = vmatpush1.msra.mxu0 0.0
        %828 = vmatprep.subr.mxu0 0.0
        %829 = vmatpush1.msra.mxu0 0.0
        %830 = vmatprep.subr.mxu0 0.0
        %831 = vmatpush1.msra.mxu0 0.0
        %832 = vmatprep.subr.mxu0 0.0
        %833 = vmatpush1.msra.mxu0 0.0
        %834 = vmatprep.subr.mxu0 0.0
        %835 = vmatpush1.msra.mxu0 0.0
        %836 = vmatprep.subr.mxu0 0.0
        %837 = vmatpush1.msra.mxu0 0.0
        %838 = vmatprep.subr.mxu0 0.0
        %839 = vmatpush1.msra.mxu0 0.0
        %840 = vmatprep.subr.mxu0 0.0
        %841 = vmatpush1.msra.mxu0 0.0
        %842 = vmatprep.subr.mxu0 0.0
        %843 = vmatpush1.msra.mxu0 0.0
        %844 = vmatprep.subr.mxu0 0.0
        %845 = vmatpush1.msra.mxu0 0.0
        %846 = vmatprep.subr.mxu0 0.0
        %847 = vmatpush1.msra.mxu0 0.0
        %848 = vmatprep.subr.mxu0 0.0
        %849 = vmatpush1.msra.mxu0 0.0
        %850 = vmatprep.subr.mxu0 0.0
        %851 = vmatpush1.msra.mxu0 0.0
        %852 = vmatprep.subr.mxu0 0.0
        %853 = vmatpush1.msra.mxu0 0.0
        %854 = vmatprep.subr.mxu0 0.0
        %855 = vmatpush1.msra.mxu0 0.0
        %856 = vmatprep.subr.mxu0 0.0
        %857 = vmatpush1.msra.mxu0 0.0
        %858 = vmatprep.subr.mxu0 0.0
        %859 = vmatpush1.msra.mxu0 0.0
        %860 = vmatprep.subr.mxu0 0.0
        %861 = vmatpush1.msra.mxu0 0.0
        %862 = vmatprep.subr.mxu0 0.0
        %863 = vmatpush1.msra.mxu0 0.0
        %864 = vmatprep.subr.mxu0 0.0
        %865 = vmatpush1.msra.mxu0 0.0
        %866 = vmatprep.subr.mxu0 0.0
        %867 = vmatpush1.msra.mxu0 0.0
        %868 = vmatprep.subr.mxu0 0.0
        %869 = vmatpush1.msra.mxu0 0.0
        %870 = vmatprep.mubr.f32.mxu0 0.0
        %871 = vmatmul.mubr.f32.gmra.mrb[0].mxu0 %v729
        %v872 = vpop.f32.mrb[0].mxu0
        %v873 = vadd.f32 0.0, %v872
        %v874 = vpop.f32.mrb[0].mxu0
        %875 = vdwg.mxu0
        %876 = vst [vmem:[%s676] sm:$0xff] %v873
        %v877 = vld [vmem:[%s591] sm:$0xff]
        %v878 = vld [vmem:[#allocation11] sm:$0xff]
        %v879 = vld [vmem:[#allocation11 + $0x8] sm:$0xff]
        %v880 = vld [vmem:[#allocation11 + $0x10] sm:$0xff]
        %v881 = vld [vmem:[#allocation11 + $0x18] sm:$0xff]
        %v882 = vld [vmem:[#allocation11 + $0x20] sm:$0xf]
        %v883 = vld [vmem:[#allocation11 + $0x28] sm:$0xf]
        %v884 = vld [vmem:[%s9] sm:$0x3]
        %v886 = vlaneseq
        %v887 = vshrl.u32 %v886, 7
        %v888 = vsub.s32 0, %v887
        %v889 = vrot.slane %v884, %v888
        %v890 = vlaneseq
        %v891 = vshrl.u32 %v890, 7
        %v892 = vsub.s32 1, %v891
        %v893 = vrot.slane %v884, %v892
        %vm896 = vcmask 162816
        %v898 = vsel %vm896, %v877, 0
        %vm900 = vcmask 1043456
        %v902 = vsel %vm900, %v882, 0
        %v905 = vsel %vm900, %v883, 0
        %907 = vmatprep.subr.mxu0 %v879
        %908 = vmatpush1.msra.mxu0 %v878
        %909 = vmatprep.subr.mxu0 %v881
        %910 = vmatpush1.msra.mxu0 %v880
        %911 = vmatprep.subr.mxu0 %v905
        %912 = vmatpush1.msra.mxu0 %v902
        %913 = vmatprep.subr.mxu0 0.0
        %914 = vmatpush1.msra.mxu0 0.0
        %915 = vmatprep.subr.mxu0 0.0
        %916 = vmatpush1.msra.mxu0 0.0
        %917 = vmatprep.subr.mxu0 0.0
        %918 = vmatpush1.msra.mxu0 0.0
        %919 = vmatprep.subr.mxu0 0.0
        %920 = vmatpush1.msra.mxu0 0.0
        %921 = vmatprep.subr.mxu0 0.0
        %922 = vmatpush1.msra.mxu0 0.0
        %923 = vmatprep.subr.mxu0 0.0
        %924 = vmatpush1.msra.mxu0 0.0
        %925 = vmatprep.subr.mxu0 0.0
        %926 = vmatpush1.msra.mxu0 0.0
        %927 = vmatprep.subr.mxu0 0.0
        %928 = vmatpush1.msra.mxu0 0.0
        %929 = vmatprep.subr.mxu0 0.0
        %930 = vmatpush1.msra.mxu0 0.0
        %931 = vmatprep.subr.mxu0 0.0
        %932 = vmatpush1.msra.mxu0 0.0
        %933 = vmatprep.subr.mxu0 0.0
        %934 = vmatpush1.msra.mxu0 0.0
        %935 = vmatprep.subr.mxu0 0.0
        %936 = vmatpush1.msra.mxu0 0.0
        %937 = vmatprep.subr.mxu0 0.0
        %938 = vmatpush1.msra.mxu0 0.0
        %939 = vmatprep.subr.mxu0 0.0
        %940 = vmatpush1.msra.mxu0 0.0
        %941 = vmatprep.subr.mxu0 0.0
        %942 = vmatpush1.msra.mxu0 0.0
        %943 = vmatprep.subr.mxu0 0.0
        %944 = vmatpush1.msra.mxu0 0.0
        %945 = vmatprep.subr.mxu0 0.0
        %946 = vmatpush1.msra.mxu0 0.0
        %947 = vmatprep.subr.mxu0 0.0
        %948 = vmatpush1.msra.mxu0 0.0
        %949 = vmatprep.subr.mxu0 0.0
        %950 = vmatpush1.msra.mxu0 0.0
        %951 = vmatprep.subr.mxu0 0.0
        %952 = vmatpush1.msra.mxu0 0.0
        %953 = vmatprep.subr.mxu0 0.0
        %954 = vmatpush1.msra.mxu0 0.0
        %955 = vmatprep.subr.mxu0 0.0
        %956 = vmatpush1.msra.mxu0 0.0
        %957 = vmatprep.subr.mxu0 0.0
        %958 = vmatpush1.msra.mxu0 0.0
        %959 = vmatprep.subr.mxu0 0.0
        %960 = vmatpush1.msra.mxu0 0.0
        %961 = vmatprep.subr.mxu0 0.0
        %962 = vmatpush1.msra.mxu0 0.0
        %963 = vmatprep.subr.mxu0 0.0
        %964 = vmatpush1.msra.mxu0 0.0
        %965 = vmatprep.subr.mxu0 0.0
        %966 = vmatpush1.msra.mxu0 0.0
        %967 = vmatprep.subr.mxu0 0.0
        %968 = vmatpush1.msra.mxu0 0.0
        %969 = vmatprep.subr.mxu0 0.0
        %970 = vmatpush1.msra.mxu0 0.0
        %971 = vmatprep.mubr.f32.mxu0 0.0
        %972 = vmatmul.mubr.f32.gmra.mrb[0].mxu0 %v898
        %v973 = vpop.f32.mrb[0].mxu0
        %v974 = vadd.f32 %v889, %v973
        %v975 = vpop.f32.mrb[0].mxu0
        %v976 = vadd.f32 %v893, %v975
        %977 = vdwg.mxu0
        %v978 = vld [vmem:[%s600] sm:$0xff]
        %v979 = vld [vmem:[%s600 + $0x8] sm:$0xff]
        %v980 = vld [vmem:[%s10] sm:$0x3]
        %v981 = vld [vmem:[%s11] sm:$0x3]
        %v982 = vadd.f32 %v978, %v979
        %983 = vadd.xlane.f32.xlu0 %v982
        %v984 = vpop.xlane.xlu0 %983
        %v985 = vrcp.pop 256.0
        %v986 = vmul.f32 %v984, %v985
        %v987 = vsub.f32 %v978, %v986
        %v988 = vsub.f32 %v979, %v986
        %v989 = vmul.f32 %v987, %v987
        %v990 = vmul.f32 %v988, %v988
        %v991 = vadd.f32 %v989, %v990
        %992 = vadd.xlane.f32.xlu0 %v991
        %v993 = vpop.xlane.xlu0 %992
        %v994 = vmul.f32 %v993, %v985
        %v995 = vadd.f32 %v994, 1e-05
        %v996 = vrsqrt.pop %v995
        %v997 = vmul.f32 %v987, %v996
        %v998 = vmul.f32 %v988, %v996
        %v1000 = vlaneseq
        %v1001 = vshrl.u32 %v1000, 7
        %v1002 = vsub.s32 0, %v1001
        %v1003 = vrot.slane %v980, %v1002
        %v1004 = vlaneseq
        %v1005 = vshrl.u32 %v1004, 7
        %v1006 = vsub.s32 1, %v1005
        %v1007 = vrot.slane %v980, %v1006
        %v1010 = vmul.f32 %v997, %v1003
        %v1011 = vmul.f32 %v998, %v1007
        %v1013 = vlaneseq
        %v1014 = vshrl.u32 %v1013, 7
        %v1015 = vsub.s32 0, %v1014
        %v1016 = vrot.slane %v981, %v1015
        %v1017 = vlaneseq
        %v1018 = vshrl.u32 %v1017, 7
        %v1019 = vsub.s32 1, %v1018
        %v1020 = vrot.slane %v981, %v1019
        %v1023 = vadd.f32 %v1010, %v1016
        %v1024 = vadd.f32 %v1011, %v1020
        %v1025 = vadd.f32 %v974, %v1023
        %v1026 = vadd.f32 %v976, %v1024
        %1027 = vst [vmem:[%s683] sm:$0xff] %v1025
        %1028 = vst [vmem:[%s683 + $0x8] sm:$0xff] %v1026
        %s1029 = sand.u32 %s339, 1
        %s1030 = scalar_lea.sflag [#allocation4], %s1029
        %s1031 = sand.u32 %s339, 1
        %s1032 = smul.addr %s1031, 8
        %s1033 = scalar_lea.vmem [#allocation13], %s1032
        %s1034 = sand.u32 %s44, 1
        %s1035 = scalar_lea.sflag [#allocation15], %s1034
        %s1036 = sand.u32 %s367, 1
        %s1037 = smul.addr %s1036, 8
        %s1038 = scalar_lea.vmem [#allocation14], %s1037
        %s1039 = sand.u32 %s44, 1
        %s1040 = scalar_lea.sflag [#allocation15], %s1039
        %s1041 = sand.u32 %s395, 1
        %s1042 = smul.addr %s1041, 8
        %s1043 = scalar_lea.vmem [#allocation16], %s1042
        %s1044 = sand.u32 %s423, 1
        %s1045 = scalar_lea.sflag [#allocation18], %s1044
        %s1046 = sand.u32 %s423, 1
        %s1047 = smul.addr %s1046, 16
        %s1048 = scalar_lea.vmem [#allocation17], %s1047
        // Predicated region
        $region93: #{tpu_custom_call.1} parent=67 // pred_check
          %p1049 = pneg %p349
        $region94: #{tpu_custom_call.1} parent=67 // pred_check_branch
          %1051 = sbr.rel (%p1049) target = $region96
        $region95: #{tpu_custom_call.1} parent=67 // pred_region
          %s1053 = ssub.s32 128, 128
          %1054 = vsyncadd %s1030, %s1053
          %s1055 = sadd.s32 %s49, %s48
          %s1056 = smul.addr %s1055, 128
          %s1057 = scalar_lea.hbm %s12, %s1056
          %s1059 = sshll.u32 %s1033, 4
          %s1060 = int_to_ptr.vmem [resolvable:$true] %s1059
          %1062 = dma.vmem_to_hbm [thread:$0]  %s1060, 128, %s1057, %s1030
        $region96: #{tpu_custom_call.1} parent=67 // pred_fallthru
          _
        // Predicated region
        $region97: #{tpu_custom_call.1} parent=67 // pred_check
          %p1063 = pneg %p377
        $region98: #{tpu_custom_call.1} parent=67 // pred_check_branch
          %1065 = sbr.rel (%p1063) target = $region100
        $region99: #{tpu_custom_call.1} parent=67 // pred_region
          %s1067 = ssub.s32 128, 128
          %1068 = vsyncadd %s1035, %s1067
          %s1069 = sadd.s32 %s49, %s48
          %s1070 = smul.addr %s1069, 128
          %s1071 = scalar_lea.hbm %s13, %s1070
          %s1073 = sshll.u32 %s1038, 4
          %s1074 = int_to_ptr.vmem [resolvable:$true] %s1073
          %1076 = dma.vmem_to_hbm [thread:$0]  %s1074, 128, %s1071, %s1035
        $region100: #{tpu_custom_call.1} parent=67 // pred_fallthru
          _
        // Predicated region
        $region101: #{tpu_custom_call.1} parent=67 // pred_check
          %p1077 = pneg %p405
        $region102: #{tpu_custom_call.1} parent=67 // pred_check_branch
          %1079 = sbr.rel (%p1077) target = $region104
        $region103: #{tpu_custom_call.1} parent=67 // pred_region
          %s1081 = ssub.s32 128, 128
          %1082 = vsyncadd %s1040, %s1081
          %s1083 = sadd.s32 %s49, %s48
          %s1084 = smul.addr %s1083, 128
          %s1085 = scalar_lea.hbm %s14, %s1084
          %s1087 = sshll.u32 %s1043, 4
          %s1088 = int_to_ptr.vmem [resolvable:$true] %s1087
          %1090 = dma.vmem_to_hbm [thread:$0]  %s1088, 128, %s1085, %s1040
        $region104: #{tpu_custom_call.1} parent=67 // pred_fallthru
          _
        // Predicated region
        $region105: #{tpu_custom_call.1} parent=67 // pred_check
          %p1091 = pneg %p433
        $region106: #{tpu_custom_call.1} parent=67 // pred_check_branch
          %1093 = sbr.rel (%p1091) target = $region108
        $region107: #{tpu_custom_call.1} parent=67 // pred_region
          %s1095 = ssub.s32 256, 256
          %1096 = vsyncadd %s1045, %s1095
          %s1097 = smul.addr %s49, 2
          %s1098 = smul.addr %s48, 2
          %s1099 = sadd.s32 %s1097, %s1098
          %s1100 = smul.addr %s1099, 128
          %s1101 = scalar_lea.hbm %s15, %s1100
          %s1103 = sshll.u32 %s1048, 4
          %s1104 = int_to_ptr.vmem [resolvable:$true] %s1103
          %1106 = dma.vmem_to_hbm [thread:$0]  %s1104, 256, %s1101, %s1045
        $region108: #{tpu_custom_call.1} parent=67 // pred_fallthru
          _
      $region68: #{tpu_custom_call.1} parent=5 // pred_fallthru
        _
      %p1107 = scmp.le.s32.totalorder 2, %s39
      // Predicated region
      $region109: #{tpu_custom_call.1} parent=5 // pred_check
        %p1108 = pneg %p1107
      $region110: #{tpu_custom_call.1} parent=5 // pred_check_branch
        %1110 = sbr.rel (%p1108) target = $region112
      $region111: #{tpu_custom_call.1} parent=5 // pred_region
        %s1111 = ssub.s32 %s39, 2
        // Predicated region
        $region113: #{tpu_custom_call.1} parent=111 // pred_check
          %p1112 = pneg %p355
        $region114: #{tpu_custom_call.1} parent=111 // pred_check_branch
          %1114 = sbr.rel (%p1112) target = $region116
        $region115: #{tpu_custom_call.1} parent=111 // pred_region
          %s1115 = sand.u32 %s340, 1
          %s1116 = scalar_lea.sflag [#allocation4], %s1115
          %s1117 = sand.u32 %s340, 1
          %s1118 = smul.addr %s1117, 8
          %s1119 = scalar_lea.vmem [#allocation13], %s1118
          %1120 = dma.done %s1116, 128
        $region116: #{tpu_custom_call.1} parent=111 // pred_fallthru
          _
        // Predicated region
        $region117: #{tpu_custom_call.1} parent=111 // pred_check
          %p1121 = pneg %p383
        $region118: #{tpu_custom_call.1} parent=111 // pred_check_branch
          %1123 = sbr.rel (%p1121) target = $region120
        $region119: #{tpu_custom_call.1} parent=111 // pred_region
          %s1124 = sand.u32 %s45, 1
          %s1125 = scalar_lea.sflag [#allocation15], %s1124
          %s1126 = sand.u32 %s368, 1
          %s1127 = smul.addr %s1126, 8
          %s1128 = scalar_lea.vmem [#allocation14], %s1127
          %1129 = dma.done %s1125, 128
        $region120: #{tpu_custom_call.1} parent=111 // pred_fallthru
          _
        // Predicated region
        $region121: #{tpu_custom_call.1} parent=111 // pred_check
          %p1130 = pneg %p411
        $region122: #{tpu_custom_call.1} parent=111 // pred_check_branch
          %1132 = sbr.rel (%p1130) target = $region124
        $region123: #{tpu_custom_call.1} parent=111 // pred_region
          %s1133 = sand.u32 %s45, 1
          %s1134 = scalar_lea.sflag [#allocation15], %s1133
          %s1135 = sand.u32 %s396, 1
          %s1136 = smul.addr %s1135, 8
          %s1137 = scalar_lea.vmem [#allocation16], %s1136
          %1138 = dma.done %s1134, 128
        $region124: #{tpu_custom_call.1} parent=111 // pred_fallthru
          _
        // Predicated region
        $region125: #{tpu_custom_call.1} parent=111 // pred_check
          %p1139 = pneg %p439
        $region126: #{tpu_custom_call.1} parent=111 // pred_check_branch
          %1141 = sbr.rel (%p1139) target = $region128
        $region127: #{tpu_custom_call.1} parent=111 // pred_region
          %s1142 = sand.u32 %s424, 1
          %s1143 = scalar_lea.sflag [#allocation18], %s1142
          %s1144 = sand.u32 %s424, 1
          %s1145 = smul.addr %s1144, 16
          %s1146 = scalar_lea.vmem [#allocation17], %s1145
          %1147 = dma.done %s1143, 256
        $region128: #{tpu_custom_call.1} parent=111 // pred_fallthru
          _
      $region112: #{tpu_custom_call.1} parent=5 // pred_fallthru
        _
    $region6: #{tpu_custom_call.1} parent=1 // loop_footer
      %s43 = sadd.s32 1, %s39
    $region7: #{tpu_custom_call.1} parent=1 // loop_footer_branch
      %38 = sbr.rel target = $region3
    $region8: #{tpu_custom_call.1} parent=1 // loop_exit
      _
    %1148 = vsyncpa [#allocation3], 1
    %s1149 = scalar_lea.sflag [#allocation3], 1
    %1150 = vsyncpa %s1149, 1
    %1151 = vsyncpa [#allocation6], 1
    %s1152 = scalar_lea.sflag [#allocation6], 1
    %1153 = vsyncpa %s1152, 1
    %1154 = vsyncpa [#allocation9], 1
    %1155 = vsyncpa [#allocation12], 1
    %1156 = vsyncpa [#allocation4], 1
    %s1157 = scalar_lea.sflag [#allocation4], 1
    %1158 = vsyncpa %s1157, 1
    %1159 = vsyncpa [#allocation15], 1
    %s1160 = scalar_lea.sflag [#allocation15], 1
    %1161 = vsyncpa %s1160, 1
    %1162 = vsyncpa [#allocation18], 1
    %s1163 = scalar_lea.sflag [#allocation18], 1
    %1164 = vsyncpa %s1163, 1

</llo_original>
